<compile_context>
chip_gen: v5e
topology: v5e:2x2
jax: 0.10.0
libtpu: 0.0.40
codegen_flags: <defaults>
</compile_context>

<pallas_src>
import math

import jax
import jax.numpy as jnp
import numpy as np
from jax.experimental import pallas as pl
from jax.experimental.pallas import tpu as pltpu


# ----------------------------------------------------------------------------
# Fused kernel: encoder layer + pooling + pooler (Linear+Tanh) + classifier.
# One grid step per block of BB batch rows.
# ----------------------------------------------------------------------------
def _layer_norm(x, g, b, eps=1e-12):
    mu = jnp.mean(x, axis=-1, keepdims=True)
    var = jnp.mean((x - mu) ** 2, axis=-1, keepdims=True)
    return (x - mu) * jax.lax.rsqrt(var + eps) * g + b


def _make_fused_kernel(pooling_strategy, BB, S, H):
    def kernel(
        x_ref, mask_ref,
        wqkv_ref, bqkv_ref, wo_ref, bo_ref,
        g1_ref, be1_ref, w1_ref, b1_ref, w2_ref, b2_ref, g2_ref, be2_ref,
        wp_ref, bp_ref, wc_ref, bc_ref,
        h_out_ref, pooled_ref, logits_ref,
    ):
        bf16 = jnp.bfloat16
        inv_sqrt_h = 1.0 / math.sqrt(H)

        x3 = x_ref[...]                       # [BB, S, H] f32 embeddings block
        xf = x3.reshape(BB * S, H)            # token-flattened for dense-M matmuls
        mask = mask_ref[...]                  # [BB, 1, S] f32 {1,0} keep/pad
        bias = (1.0 - mask) * (-1e9)          # additive attention bias, in-kernel

        # fused QKV projection over all BB*S tokens (bf16 in, f32 acc)
        x_bf = xf.astype(bf16)
        qkv = (jnp.dot(x_bf, wqkv_ref[...],
                       preferred_element_type=jnp.float32) + bqkv_ref[...])
        q = qkv[:, :H].reshape(BB, S, H).astype(bf16)
        k = qkv[:, H:2 * H].reshape(BB, S, H).astype(bf16)
        v = qkv[:, 2 * H:].reshape(BB, S, H).astype(bf16)

        # single-head attention per batch row (batched matmul over BB rows);
        # both operands contract their last dim -> no transpose of K required.
        scores = jnp.einsum("bqd,bkd->bqk", q, k,
                            preferred_element_type=jnp.float32)
        scores = scores * inv_sqrt_h + bias          # f32 scores + f32 mask bias
        s_max = jnp.max(scores, axis=-1, keepdims=True)
        e = jnp.exp(scores - s_max)
        attn = e * pl.reciprocal(jnp.sum(e, axis=-1, keepdims=True), approx=True)

        ctx = jnp.einsum("bqk,bkd->bqd", attn.astype(bf16), v,
                         preferred_element_type=jnp.float32)
        ctx_f = ctx.reshape(BB * S, H)
        attn_out = (jnp.dot(ctx_f.astype(bf16), wo_ref[...],
                            preferred_element_type=jnp.float32) + bo_ref[...])
        h1 = _layer_norm(xf + attn_out, g1_ref[...], be1_ref[...])

        ffn_h = (jnp.dot(h1.astype(bf16), w1_ref[...],
                         preferred_element_type=jnp.float32) + b1_ref[...])
        ffn_h = jax.nn.gelu(ffn_h, approximate=True)
        ffn = (jnp.dot(ffn_h.astype(bf16), w2_ref[...],
                       preferred_element_type=jnp.float32) + b2_ref[...])
        hidden = _layer_norm(h1 + ffn, g2_ref[...], be2_ref[...])

        hidden3 = hidden.reshape(BB, S, H)
        h_out_ref[...] = hidden3

        # ---- fused wrapper head: pooling + pooler (Linear+Tanh) + classifier,
        #      batched over the whole BB row block ----
        if pooling_strategy == "mean":
            summed = jnp.einsum("bos,bsh->boh", mask, hidden3,
                                preferred_element_type=jnp.float32)[:, 0, :]  # [BB,H]
            denom = jnp.maximum(jnp.sum(mask, axis=-1), 1e-9)                  # [BB,1]
            vec = summed * pl.reciprocal(denom, approx=True)
        elif pooling_strategy == "max":
            # NOTE: matches the PyTorch module exactly: UNmasked max over all S positions.
            vec = jnp.max(hidden3, axis=1)                                      # [BB,H]
        else:  # 'cls' and the fallback branch
            vec = hidden3[:, 0, :]                                              # [BB,H]

        pooled = jnp.tanh(jnp.dot(vec.astype(bf16), wp_ref[...],
                                  preferred_element_type=jnp.float32) + bp_ref[...])
        pooled_ref[...] = pooled
        # classifier output padded to a full 128-lane width (sliced back outside)
        logits_ref[...] = (jnp.dot(pooled.astype(bf16), wc_ref[...],
                                   preferred_element_type=jnp.float32) + bc_ref[...])

    return kernel


def fused_forward(x_emb, attention_mask, p, pooling_strategy):
    B, S, H = x_emb.shape
    C = p["wc"].shape[1]
    C_pad = p["wc_pad"].shape[1]

    # Batch-block size: take the whole batch when small; otherwise an
    # 8-row-aligned block that keeps ~256 tokens of MXU M-occupancy per step.
    max_rows = max(1, 256 // S)
    if B <= max_rows:
        BB = B
    else:
        BB = max(8, (max_rows // 8) * 8)
        BB = min(BB, B)
    NB = pl.cdiv(B, BB)

    # hoisted: 0/1 mask computed once outside the kernel (bias derived in-kernel)
    mask3 = attention_mask.astype(jnp.float32).reshape(B, 1, S)

    weights = [p["wqkv"], p["bqkv"], p["wo"], p["bo"],
               p["g1"], p["be1"], p["w1"], p["b1"], p["w2"], p["b2"],
               p["g2"], p["be2"], p["wp"], p["bp"], p["wc_pad"], p["bc_pad"]]

    def rep_spec(shape):  # grid-invariant (replicated) weight block
        nd = len(shape)
        return pl.BlockSpec(shape, lambda b, _nd=nd: (0,) * _nd)

    in_specs = ([pl.BlockSpec((BB, S, H), lambda b: (b, 0, 0)),   # embeddings block
                 pl.BlockSpec((BB, 1, S), lambda b: (b, 0, 0))]   # 0/1 mask block
                + [rep_spec(w.shape) for w in weights])

    out_specs = (pl.BlockSpec((BB, S, H), lambda b: (b, 0, 0)),     # hidden states
                 pl.BlockSpec((BB, H), lambda b: (b, 0)),           # pooled (lane-dense)
                 pl.BlockSpec((BB, C_pad), lambda b: (b, 0)))       # logits (padded lanes)
    out_shape = (jax.ShapeDtypeStruct((B, S, H), jnp.float32),
                 jax.ShapeDtypeStruct((B, H), jnp.float32),
                 jax.ShapeDtypeStruct((B, C_pad), jnp.float32))

    hidden, pooled, logits_pad = pl.pallas_call(
        _make_fused_kernel(pooling_strategy, BB, S, H),
        grid=(NB,),
        in_specs=in_specs,
        out_specs=out_specs,
        out_shape=out_shape,
        # "parallel" lets v7x shard batch blocks across its 2 TensorCores once
        # NB > 1; at NB == 1 it is a no-op.  Explicit VMEM budget (safe on all
        # generations) so scaling H/FFN toward real BERT sizes does not hit the
        # default scoped limit silently.
        compiler_params=pltpu.CompilerParams(
            dimension_semantics=("parallel",),
            vmem_limit_bytes=32 * 1024 * 1024),
    )(x_emb, mask3, *weights)

    return hidden, pooled, logits_pad[:, :C]


# ----------------------------------------------------------------------------
# Parameter init (deterministic, synthetic) and full forward pass.
# ----------------------------------------------------------------------------
def init_params(key, vocab, max_seq, hidden, ffn, num_classes, num_classes_padded):
    ks = jax.random.split(key, 12)
    n = lambda k, s: jax.random.normal(k, s, jnp.float32) * 0.02
    bf = jnp.bfloat16

    wc = n(ks[8], (hidden, num_classes))
    bc = n(ks[9], (1, num_classes))
    wc_pad = jnp.zeros((hidden, num_classes_padded), jnp.float32).at[:, :num_classes].set(wc)
    bc_pad = jnp.zeros((1, num_classes_padded), jnp.float32).at[:, :num_classes].set(bc)

    return {
        # embeddings (plain-JAX gather glue)
        "tok_emb": n(ks[0], (vocab, hidden)),
        "pos_emb": n(ks[1], (max_seq, hidden)),
        # encoder layer (weights stored bf16 for MXU; biases / LN params f32)
        "wqkv": n(ks[2], (hidden, 3 * hidden)).astype(bf),
        "bqkv": jnp.zeros((1, 3 * hidden), jnp.float32),
        "wo": n(ks[3], (hidden, hidden)).astype(bf),
        "bo": jnp.zeros((1, hidden), jnp.float32),
        "g1": jnp.ones((1, hidden), jnp.float32),
        "be1": jnp.zeros((1, hidden), jnp.float32),
        "w1": n(ks[4], (hidden, ffn)).astype(bf),
        "b1": jnp.zeros((1, ffn), jnp.float32),
        "w2": n(ks[5], (ffn, hidden)).astype(bf),
        "b2": jnp.zeros((1, hidden), jnp.float32),
        "g2": jnp.ones((1, hidden), jnp.float32),
        "be2": jnp.zeros((1, hidden), jnp.float32),
        # wrapper pooler (Linear + Tanh) and classifier
        "wp": n(ks[6], (hidden, hidden)).astype(bf),
        "bp": n(ks[7], (1, hidden)),
        "wc": wc.astype(bf),          # unpadded (reference + slicing)
        "bc": bc,
        "wc_pad": wc_pad.astype(bf),  # lane-padded kernel weights
        "bc_pad": bc_pad,
    }


def plm_wrapper_forward(input_ids, attention_mask, params, pooling_strategy="cls"):
    """Mirrors PretrainedLanguageModelWrapper.forward (return_dict=True)."""
    B, S = input_ids.shape
    # embedding gather — glue
    x_emb = jnp.take(params["tok_emb"], input_ids, axis=0) + params["pos_emb"][:S][None]
    hidden, pooled, logits = fused_forward(x_emb, attention_mask, params, pooling_strategy)
    # TODO(synk): synthetic base model ignores token_type_ids and does not emit
    # per-layer hidden_states / attention weights, so those entries stay None
    # (same as HF default with output_hidden_states/attentions disabled).
    return {
        "last_hidden_state": hidden,
        "pooler_output": pooled,
        "hidden_states": None,
        "attention_weights": None,
        "logits": logits,
    }


# ----------------------------------------------------------------------------
# Pure-JAX reference (mirrors the kernel's bf16-in / f32-acc matmuls).
# ----------------------------------------------------------------------------
def _reference_forward(input_ids, attention_mask, p, pooling_strategy):
    bf = jnp.bfloat16
    B, S = input_ids.shape
    x = jnp.take(p["tok_emb"], input_ids, axis=0) + p["pos_emb"][:S][None]
    mask = attention_mask.astype(jnp.float32)
    H = x.shape[-1]

    def ln(v, g, b, eps=1e-12):
        mu = v.mean(-1, keepdims=True)
        var = ((v - mu) ** 2).mean(-1, keepdims=True)
        return (v - mu) * jax.lax.rsqrt(var + eps) * g + b

    def proj(a, w, b):
        return jnp.einsum("bsh,hk->bsk", a.astype(bf), w,
                          preferred_element_type=jnp.float32) + b

    qkv = proj(x, p["wqkv"], p["bqkv"])
    q, k, v = qkv[..., :H], qkv[..., H:2 * H], qkv[..., 2 * H:]
    scores = jnp.einsum("bqh,bkh->bqk", q.astype(bf), k.astype(bf),
                        preferred_element_type=jnp.float32) / math.sqrt(H)
    scores = scores + (1.0 - mask)[:, None, :] * (-1e9)
    attn = jax.nn.softmax(scores, axis=-1)
    ctx = jnp.einsum("bqk,bkh->bqh", attn.astype(bf), v.astype(bf),
                     preferred_element_type=jnp.float32)
    h1 = ln(x + proj(ctx, p["wo"], p["bo"]), p["g1"], p["be1"])
    ffn_h = jax.nn.gelu(proj(h1, p["w1"], p["b1"]), approximate=True)
    hidden = ln(h1 + proj(ffn_h, p["w2"], p["b2"]), p["g2"], p["be2"])

    if pooling_strategy == "mean":
        me = mask[:, :, None]
        vec = (hidden * me).sum(1) / jnp.maximum(me.sum(1), 1e-9)
    elif pooling_strategy == "max":
        vec = hidden.max(1)
    else:
        vec = hidden[:, 0, :]
    pooled = jnp.tanh(jnp.dot(vec.astype(bf), p["wp"],
                              preferred_element_type=jnp.float32) + p["bp"])
    logits = jnp.dot(pooled.astype(bf), p["wc"],
                     preferred_element_type=jnp.float32) + p["bc"]
    return hidden, pooled, logits


# ----------------------------------------------------------------------------
if __name__ == "__main__":
    B, S, H, FFN, VOCAB, C, C_PAD = 2, 8, 128, 256, 50, 5, 128
    key = jax.random.PRNGKey(0)
    k_par, k_ids = jax.random.split(key)

    params = init_params(k_par, VOCAB, S, H, FFN, C, C_PAD)
    input_ids = jax.random.randint(k_ids, (B, S), 0, VOCAB, dtype=jnp.int32)
    attention_mask = jnp.array(
        [[1, 1, 1, 1, 1, 1, 1, 1],
         [1, 1, 1, 1, 1, 0, 0, 0]], dtype=jnp.int32)

    for strategy in ("mean", "cls", "max"):
        out = plm_wrapper_forward(input_ids, attention_mask, params,
                                  pooling_strategy=strategy)
        jax.block_until_ready(out["logits"])

        ref_h, ref_p, ref_l = _reference_forward(input_ids, attention_mask, params, strategy)
        np.testing.assert_allclose(np.asarray(out["last_hidden_state"]), np.asarray(ref_h),
                                   rtol=2e-2, atol=2e-2)
        np.testing.assert_allclose(np.asarray(out["pooler_output"]), np.asarray(ref_p),
                                   rtol=2e-2, atol=2e-2)
        np.testing.assert_allclose(np.asarray(out["logits"]), np.asarray(ref_l),
                                   rtol=2e-2, atol=2e-2)

    print("KERNEL_OK")
</pallas_src>

<mosaic_0001>
module attributes {stable_mosaic.version = 11 : i64} {
  func.func @kernel(%arg0: i32, %arg1: memref<2x8x128xf32, #tpu.memory_space<vmem>>, %arg2: memref<2x1x8xf32, #tpu.memory_space<vmem>>, %arg3: memref<128x384xbf16, #tpu.memory_space<vmem>>, %arg4: memref<1x384xf32, #tpu.memory_space<vmem>>, %arg5: memref<128x128xbf16, #tpu.memory_space<vmem>>, %arg6: memref<1x128xf32, #tpu.memory_space<vmem>>, %arg7: memref<1x128xf32, #tpu.memory_space<vmem>>, %arg8: memref<1x128xf32, #tpu.memory_space<vmem>>, %arg9: memref<128x256xbf16, #tpu.memory_space<vmem>>, %arg10: memref<1x256xf32, #tpu.memory_space<vmem>>, %arg11: memref<256x128xbf16, #tpu.memory_space<vmem>>, %arg12: memref<1x128xf32, #tpu.memory_space<vmem>>, %arg13: memref<1x128xf32, #tpu.memory_space<vmem>>, %arg14: memref<1x128xf32, #tpu.memory_space<vmem>>, %arg15: memref<128x128xbf16, #tpu.memory_space<vmem>>, %arg16: memref<1x128xf32, #tpu.memory_space<vmem>>, %arg17: memref<128x128xbf16, #tpu.memory_space<vmem>>, %arg18: memref<1x128xf32, #tpu.memory_space<vmem>>, %arg19: memref<2x8x128xf32, #tpu.memory_space<vmem>>, %arg20: memref<2x128xf32, #tpu.memory_space<vmem>>, %arg21: memref<2x128xf32, #tpu.memory_space<vmem>>) attributes {dimension_semantics = [#tpu.dimension_semantics<parallel>], iteration_bounds = array<i64: 1>, scalar_prefetch = 0 : i64, scratch_operands = 0 : i64, tpu.core_type = #tpu.core_type<tc>, window_params = [{transform_indices = @transform_0, window_bounds = array<i64: 2, 8, 128>}, {transform_indices = @transform_1, window_bounds = array<i64: 2, 1, 8>}, {pipeline_mode = #tpu.pipeline_mode<synchronous>, transform_indices = @transform_2, window_bounds = array<i64: 128, 384>}, {pipeline_mode = #tpu.pipeline_mode<synchronous>, transform_indices = @transform_3, window_bounds = array<i64: 1, 384>}, {pipeline_mode = #tpu.pipeline_mode<synchronous>, transform_indices = @transform_4, window_bounds = array<i64: 128, 128>}, {pipeline_mode = #tpu.pipeline_mode<synchronous>, transform_indices = @transform_5, window_bounds = array<i64: 1, 128>}, {pipeline_mode = #tpu.pipeline_mode<synchronous>, transform_indices = @transform_6, window_bounds = array<i64: 1, 128>}, {pipeline_mode = #tpu.pipeline_mode<synchronous>, transform_indices = @transform_7, window_bounds = array<i64: 1, 128>}, {pipeline_mode = #tpu.pipeline_mode<synchronous>, transform_indices = @transform_8, window_bounds = array<i64: 128, 256>}, {pipeline_mode = #tpu.pipeline_mode<synchronous>, transform_indices = @transform_9, window_bounds = array<i64: 1, 256>}, {pipeline_mode = #tpu.pipeline_mode<synchronous>, transform_indices = @transform_10, window_bounds = array<i64: 256, 128>}, {pipeline_mode = #tpu.pipeline_mode<synchronous>, transform_indices = @transform_11, window_bounds = array<i64: 1, 128>}, {pipeline_mode = #tpu.pipeline_mode<synchronous>, transform_indices = @transform_12, window_bounds = array<i64: 1, 128>}, {pipeline_mode = #tpu.pipeline_mode<synchronous>, transform_indices = @transform_13, window_bounds = array<i64: 1, 128>}, {pipeline_mode = #tpu.pipeline_mode<synchronous>, transform_indices = @transform_14, window_bounds = array<i64: 128, 128>}, {pipeline_mode = #tpu.pipeline_mode<synchronous>, transform_indices = @transform_15, window_bounds = array<i64: 1, 128>}, {pipeline_mode = #tpu.pipeline_mode<synchronous>, transform_indices = @transform_16, window_bounds = array<i64: 128, 128>}, {pipeline_mode = #tpu.pipeline_mode<synchronous>, transform_indices = @transform_17, window_bounds = array<i64: 1, 128>}, {transform_indices = @transform_18, window_bounds = array<i64: 2, 8, 128>}, {transform_indices = @transform_19, window_bounds = array<i64: 2, 128>}, {transform_indices = @transform_20, window_bounds = array<i64: 2, 128>}]} {
    %c0 = arith.constant 0 : index
    %c0_0 = arith.constant 0 : index
    %c0_1 = arith.constant 0 : index
    %0 = vector.load %arg1[%c0, %c0_0, %c0_1] : memref<2x8x128xf32, #tpu.memory_space<vmem>>, vector<2x8x128xf32>
    %1 = vector.shape_cast %0 : vector<2x8x128xf32> to vector<16x128xf32>
    %c0_2 = arith.constant 0 : index
    %c0_3 = arith.constant 0 : index
    %c0_4 = arith.constant 0 : index
    %2 = vector.load %arg2[%c0_2, %c0_3, %c0_4] : memref<2x1x8xf32, #tpu.memory_space<vmem>>, vector<2x1x8xf32>
    %cst = arith.constant 1.000000e+00 : f32
    %3 = vector.broadcast %cst : f32 to vector<2x1x8xf32>
    %4 = arith.subf %3, %2 : vector<2x1x8xf32>
    %cst_5 = arith.constant -1.000000e+09 : f32
    %5 = vector.broadcast %cst_5 : f32 to vector<2x1x8xf32>
    %6 = arith.mulf %4, %5 : vector<2x1x8xf32>
    %7 = arith.truncf %1 : vector<16x128xf32> to vector<16x128xbf16>
    %c0_6 = arith.constant 0 : index
    %c0_7 = arith.constant 0 : index
    %8 = vector.load %arg3[%c0_6, %c0_7] : memref<128x384xbf16, #tpu.memory_space<vmem>>, vector<128x384xbf16>
    %cst_8 = arith.constant dense<0.000000e+00> : vector<16x384xf32>
    %9 = tpu.matmul %7, %8, %cst_8 {dimension_numbers = #tpu.dot_dimension_numbers<[1], [0], [0], [1], [0, 0, 1, 1], [], []>} : vector<16x128xbf16>, vector<128x384xbf16>, vector<16x384xf32> -> vector<16x384xf32>
    %c0_9 = arith.constant 0 : index
    %c0_10 = arith.constant 0 : index
    %10 = vector.load %arg4[%c0_9, %c0_10] : memref<1x384xf32, #tpu.memory_space<vmem>>, vector<1x384xf32>
    %11 = vector.broadcast %10 : vector<1x384xf32> to vector<16x384xf32>
    %12 = arith.addf %9, %11 : vector<16x384xf32>
    %13 = vector.extract_strided_slice %12 {offsets = [0, 0], sizes = [16, 128], strides = [1, 1]} : vector<16x384xf32> to vector<16x128xf32>
    %14 = vector.shape_cast %13 : vector<16x128xf32> to vector<2x8x128xf32>
    %15 = arith.truncf %14 : vector<2x8x128xf32> to vector<2x8x128xbf16>
    %16 = vector.extract_strided_slice %12 {offsets = [0, 128], sizes = [16, 128], strides = [1, 1]} : vector<16x384xf32> to vector<16x128xf32>
    %17 = vector.shape_cast %16 : vector<16x128xf32> to vector<2x8x128xf32>
    %18 = arith.truncf %17 : vector<2x8x128xf32> to vector<2x8x128xbf16>
    %19 = vector.extract_strided_slice %12 {offsets = [0, 256], sizes = [16, 128], strides = [1, 1]} : vector<16x384xf32> to vector<16x128xf32>
    %20 = vector.shape_cast %19 : vector<16x128xf32> to vector<2x8x128xf32>
    %21 = arith.truncf %20 : vector<2x8x128xf32> to vector<2x8x128xbf16>
    "tpu.trace_start"() <{level = 10 : i32, message = "bqd,bkd->bqk"}> : () -> ()
    %cst_11 = arith.constant dense<0.000000e+00> : vector<2x8x8xf32>
    %22 = tpu.matmul %15, %18, %cst_11 {dimension_numbers = #tpu.dot_dimension_numbers<[2], [2], [1], [1], [0, 0, 0, 1, 1, 1], [0], [0]>} : vector<2x8x128xbf16>, vector<2x8x128xbf16>, vector<2x8x8xf32> -> vector<2x8x8xf32>
    "tpu.trace_stop"() : () -> ()
    %cst_12 = arith.constant 0.0883883461 : f32
    %23 = vector.broadcast %cst_12 : f32 to vector<2x8x8xf32>
    %24 = arith.mulf %22, %23 : vector<2x8x8xf32>
    %25 = vector.broadcast %6 : vector<2x1x8xf32> to vector<2x8x8xf32>
    %26 = arith.addf %24, %25 : vector<2x8x8xf32>
    %cst_13 = arith.constant dense<0xFF800000> : vector<2x8xf32>
    %27 = vector.multi_reduction <maximumf>, %26, %cst_13 [2] : vector<2x8x8xf32> to vector<2x8xf32>
    %28 = vector.shape_cast %27 : vector<2x8xf32> to vector<2x8x1xf32>
    %29 = vector.broadcast %28 : vector<2x8x1xf32> to vector<2x8x8xf32>
    %30 = arith.subf %26, %29 : vector<2x8x8xf32>
    %31 = math.exp %30 : vector<2x8x8xf32>
    %cst_14 = arith.constant dense<0.000000e+00> : vector<2x8xf32>
    %32 = vector.multi_reduction <add>, %31, %cst_14 [2] : vector<2x8x8xf32> to vector<2x8xf32>
    %33 = vector.shape_cast %32 : vector<2x8xf32> to vector<2x8x1xf32>
    %34 = tpu.reciprocal %33 {approx = true} : vector<2x8x1xf32> -> vector<2x8x1xf32>
    %35 = vector.broadcast %34 : vector<2x8x1xf32> to vector<2x8x8xf32>
    %36 = arith.mulf %31, %35 : vector<2x8x8xf32>
    %37 = arith.truncf %36 : vector<2x8x8xf32> to vector<2x8x8xbf16>
    "tpu.trace_start"() <{level = 10 : i32, message = "bqk,bkd->bqd"}> : () -> ()
    %cst_15 = arith.constant dense<0.000000e+00> : vector<2x8x128xf32>
    %38 = tpu.matmul %37, %21, %cst_15 {dimension_numbers = #tpu.dot_dimension_numbers<[2], [1], [1], [2], [0, 0, 0, 1, 1, 2], [0], [0]>} : vector<2x8x8xbf16>, vector<2x8x128xbf16>, vector<2x8x128xf32> -> vector<2x8x128xf32>
    "tpu.trace_stop"() : () -> ()
    %39 = vector.shape_cast %38 : vector<2x8x128xf32> to vector<16x128xf32>
    %40 = arith.truncf %39 : vector<16x128xf32> to vector<16x128xbf16>
    %c0_16 = arith.constant 0 : index
    %c0_17 = arith.constant 0 : index
    %41 = vector.load %arg5[%c0_16, %c0_17] : memref<128x128xbf16, #tpu.memory_space<vmem>>, vector<128x128xbf16>
    %cst_18 = arith.constant dense<0.000000e+00> : vector<16x128xf32>
    %42 = tpu.matmul %40, %41, %cst_18 {dimension_numbers = #tpu.dot_dimension_numbers<[1], [0], [0], [1], [0, 0, 1, 1], [], []>} : vector<16x128xbf16>, vector<128x128xbf16>, vector<16x128xf32> -> vector<16x128xf32>
    %c0_19 = arith.constant 0 : index
    %c0_20 = arith.constant 0 : index
    %43 = vector.load %arg6[%c0_19, %c0_20] : memref<1x128xf32, #tpu.memory_space<vmem>>, vector<1x128xf32>
    %44 = vector.broadcast %43 : vector<1x128xf32> to vector<16x128xf32>
    %45 = arith.addf %42, %44 : vector<16x128xf32>
    %46 = arith.addf %1, %45 : vector<16x128xf32>
    %c0_21 = arith.constant 0 : index
    %c0_22 = arith.constant 0 : index
    %47 = vector.load %arg7[%c0_21, %c0_22] : memref<1x128xf32, #tpu.memory_space<vmem>>, vector<1x128xf32>
    %c0_23 = arith.constant 0 : index
    %c0_24 = arith.constant 0 : index
    %48 = vector.load %arg8[%c0_23, %c0_24] : memref<1x128xf32, #tpu.memory_space<vmem>>, vector<1x128xf32>
    %cst_25 = arith.constant dense<0.000000e+00> : vector<16xf32>
    %49 = vector.multi_reduction <add>, %46, %cst_25 [1] : vector<16x128xf32> to vector<16xf32>
    %50 = vector.shape_cast %49 : vector<16xf32> to vector<16x1xf32>
    %cst_26 = arith.constant 1.280000e+02 : f32
    %51 = vector.broadcast %cst_26 : f32 to vector<16x1xf32>
    %52 = arith.divf %50, %51 : vector<16x1xf32>
    %53 = vector.broadcast %52 : vector<16x1xf32> to vector<16x128xf32>
    %54 = arith.subf %46, %53 : vector<16x128xf32>
    %55 = arith.mulf %54, %54 : vector<16x128xf32>
    %cst_27 = arith.constant dense<0.000000e+00> : vector<16xf32>
    %56 = vector.multi_reduction <add>, %55, %cst_27 [1] : vector<16x128xf32> to vector<16xf32>
    %57 = vector.shape_cast %56 : vector<16xf32> to vector<16x1xf32>
    %cst_28 = arith.constant 1.280000e+02 : f32
    %58 = vector.broadcast %cst_28 : f32 to vector<16x1xf32>
    %59 = arith.divf %57, %58 : vector<16x1xf32>
    %60 = vector.broadcast %52 : vector<16x1xf32> to vector<16x128xf32>
    %61 = arith.subf %46, %60 : vector<16x128xf32>
    %cst_29 = arith.constant 9.99999996E-13 : f32
    %62 = vector.broadcast %cst_29 : f32 to vector<16x1xf32>
    %63 = arith.addf %59, %62 : vector<16x1xf32>
    %64 = math.rsqrt %63 : vector<16x1xf32>
    %65 = vector.broadcast %64 : vector<16x1xf32> to vector<16x128xf32>
    %66 = arith.mulf %61, %65 : vector<16x128xf32>
    %67 = vector.broadcast %47 : vector<1x128xf32> to vector<16x128xf32>
    %68 = arith.mulf %66, %67 : vector<16x128xf32>
    %69 = vector.broadcast %48 : vector<1x128xf32> to vector<16x128xf32>
    %70 = arith.addf %68, %69 : vector<16x128xf32>
    %71 = arith.truncf %70 : vector<16x128xf32> to vector<16x128xbf16>
    %c0_30 = arith.constant 0 : index
    %c0_31 = arith.constant 0 : index
    %72 = vector.load %arg9[%c0_30, %c0_31] : memref<128x256xbf16, #tpu.memory_space<vmem>>, vector<128x256xbf16>
    %cst_32 = arith.constant dense<0.000000e+00> : vector<16x256xf32>
    %73 = tpu.matmul %71, %72, %cst_32 {dimension_numbers = #tpu.dot_dimension_numbers<[1], [0], [0], [1], [0, 0, 1, 1], [], []>} : vector<16x128xbf16>, vector<128x256xbf16>, vector<16x256xf32> -> vector<16x256xf32>
    %c0_33 = arith.constant 0 : index
    %c0_34 = arith.constant 0 : index
    %74 = vector.load %arg10[%c0_33, %c0_34] : memref<1x256xf32, #tpu.memory_space<vmem>>, vector<1x256xf32>
    %75 = vector.broadcast %74 : vector<1x256xf32> to vector<16x256xf32>
    %76 = arith.addf %73, %75 : vector<16x256xf32>
    %77 = arith.mulf %76, %76 : vector<16x256xf32>
    %78 = arith.mulf %76, %77 : vector<16x256xf32>
    %cst_35 = arith.constant 4.471500e-02 : f32
    %79 = vector.broadcast %cst_35 : f32 to vector<16x256xf32>
    %80 = arith.mulf %79, %78 : vector<16x256xf32>
    %81 = arith.addf %76, %80 : vector<16x256xf32>
    %cst_36 = arith.constant 0.797884583 : f32
    %82 = vector.broadcast %cst_36 : f32 to vector<16x256xf32>
    %83 = arith.mulf %82, %81 : vector<16x256xf32>
    %84 = math.tanh %83 : vector<16x256xf32>
    %cst_37 = arith.constant 1.000000e+00 : f32
    %85 = vector.broadcast %cst_37 : f32 to vector<16x256xf32>
    %86 = arith.addf %85, %84 : vector<16x256xf32>
    %cst_38 = arith.constant 5.000000e-01 : f32
    %87 = vector.broadcast %cst_38 : f32 to vector<16x256xf32>
    %88 = arith.mulf %87, %86 : vector<16x256xf32>
    %89 = arith.mulf %76, %88 : vector<16x256xf32>
    %90 = arith.truncf %89 : vector<16x256xf32> to vector<16x256xbf16>
    %c0_39 = arith.constant 0 : index
    %c0_40 = arith.constant 0 : index
    %91 = vector.load %arg11[%c0_39, %c0_40] : memref<256x128xbf16, #tpu.memory_space<vmem>>, vector<256x128xbf16>
    %cst_41 = arith.constant dense<0.000000e+00> : vector<16x128xf32>
    %92 = tpu.matmul %90, %91, %cst_41 {dimension_numbers = #tpu.dot_dimension_numbers<[1], [0], [0], [1], [0, 0, 1, 1], [], []>} : vector<16x256xbf16>, vector<256x128xbf16>, vector<16x128xf32> -> vector<16x128xf32>
    %c0_42 = arith.constant 0 : index
    %c0_43 = arith.constant 0 : index
    %93 = vector.load %arg12[%c0_42, %c0_43] : memref<1x128xf32, #tpu.memory_space<vmem>>, vector<1x128xf32>
    %94 = vector.broadcast %93 : vector<1x128xf32> to vector<16x128xf32>
    %95 = arith.addf %92, %94 : vector<16x128xf32>
    %96 = arith.addf %70, %95 : vector<16x128xf32>
    %c0_44 = arith.constant 0 : index
    %c0_45 = arith.constant 0 : index
    %97 = vector.load %arg13[%c0_44, %c0_45] : memref<1x128xf32, #tpu.memory_space<vmem>>, vector<1x128xf32>
    %c0_46 = arith.constant 0 : index
    %c0_47 = arith.constant 0 : index
    %98 = vector.load %arg14[%c0_46, %c0_47] : memref<1x128xf32, #tpu.memory_space<vmem>>, vector<1x128xf32>
    %cst_48 = arith.constant dense<0.000000e+00> : vector<16xf32>
    %99 = vector.multi_reduction <add>, %96, %cst_48 [1] : vector<16x128xf32> to vector<16xf32>
    %100 = vector.shape_cast %99 : vector<16xf32> to vector<16x1xf32>
    %cst_49 = arith.constant 1.280000e+02 : f32
    %101 = vector.broadcast %cst_49 : f32 to vector<16x1xf32>
    %102 = arith.divf %100, %101 : vector<16x1xf32>
    %103 = vector.broadcast %102 : vector<16x1xf32> to vector<16x128xf32>
    %104 = arith.subf %96, %103 : vector<16x128xf32>
    %105 = arith.mulf %104, %104 : vector<16x128xf32>
    %cst_50 = arith.constant dense<0.000000e+00> : vector<16xf32>
    %106 = vector.multi_reduction <add>, %105, %cst_50 [1] : vector<16x128xf32> to vector<16xf32>
    %107 = vector.shape_cast %106 : vector<16xf32> to vector<16x1xf32>
    %cst_51 = arith.constant 1.280000e+02 : f32
    %108 = vector.broadcast %cst_51 : f32 to vector<16x1xf32>
    %109 = arith.divf %107, %108 : vector<16x1xf32>
    %110 = vector.broadcast %102 : vector<16x1xf32> to vector<16x128xf32>
    %111 = arith.subf %96, %110 : vector<16x128xf32>
    %cst_52 = arith.constant 9.99999996E-13 : f32
    %112 = vector.broadcast %cst_52 : f32 to vector<16x1xf32>
    %113 = arith.addf %109, %112 : vector<16x1xf32>
    %114 = math.rsqrt %113 : vector<16x1xf32>
    %115 = vector.broadcast %114 : vector<16x1xf32> to vector<16x128xf32>
    %116 = arith.mulf %111, %115 : vector<16x128xf32>
    %117 = vector.broadcast %97 : vector<1x128xf32> to vector<16x128xf32>
    %118 = arith.mulf %116, %117 : vector<16x128xf32>
    %119 = vector.broadcast %98 : vector<1x128xf32> to vector<16x128xf32>
    %120 = arith.addf %118, %119 : vector<16x128xf32>
    %121 = vector.shape_cast %120 : vector<16x128xf32> to vector<2x8x128xf32>
    %c0_53 = arith.constant 0 : index
    %c0_54 = arith.constant 0 : index
    %c0_55 = arith.constant 0 : index
    %122 = vector.load %arg19[%c0_53, %c0_54, %c0_55] : memref<2x8x128xf32, #tpu.memory_space<vmem>>, vector<2x8x128xf32>
    tpu.vector_store %arg19[%c0_53, %c0_54, %c0_55], %121 {strides = array<i32>} : memref<2x8x128xf32, #tpu.memory_space<vmem>>, vector<2x8x128xf32>,
    "tpu.trace_start"() <{level = 10 : i32, message = "bos,bsh->boh"}> : () -> ()
    %cst_56 = arith.constant dense<0.000000e+00> : vector<2x1x128xf32>
    %123 = tpu.matmul %2, %121, %cst_56 {dimension_numbers = #tpu.dot_dimension_numbers<[2], [1], [1], [2], [0, 0, 0, 1, 1, 2], [0], [0]>} : vector<2x1x8xf32>, vector<2x8x128xf32>, vector<2x1x128xf32> -> vector<2x1x128xf32>
    "tpu.trace_stop"() : () -> ()
    %124 = vector.shape_cast %123 : vector<2x1x128xf32> to vector<2x128xf32>
    %cst_57 = arith.constant dense<0.000000e+00> : vector<2x1xf32>
    %125 = vector.multi_reduction <add>, %2, %cst_57 [2] : vector<2x1x8xf32> to vector<2x1xf32>
    %cst_58 = arith.constant 9.99999971E-10 : f32
    %126 = vector.broadcast %cst_58 : f32 to vector<2x1xf32>
    %127 = arith.maximumf %125, %126 : vector<2x1xf32>
    %128 = tpu.reciprocal %127 {approx = true} : vector<2x1xf32> -> vector<2x1xf32>
    %129 = vector.broadcast %128 : vector<2x1xf32> to vector<2x128xf32>
    %130 = arith.mulf %124, %129 : vector<2x128xf32>
    %131 = arith.truncf %130 : vector<2x128xf32> to vector<2x128xbf16>
    %c0_59 = arith.constant 0 : index
    %c0_60 = arith.constant 0 : index
    %132 = vector.load %arg15[%c0_59, %c0_60] : memref<128x128xbf16, #tpu.memory_space<vmem>>, vector<128x128xbf16>
    %cst_61 = arith.constant dense<0.000000e+00> : vector<2x128xf32>
    %133 = tpu.matmul %131, %132, %cst_61 {dimension_numbers = #tpu.dot_dimension_numbers<[1], [0], [0], [1], [0, 0, 1, 1], [], []>} : vector<2x128xbf16>, vector<128x128xbf16>, vector<2x128xf32> -> vector<2x128xf32>
    %c0_62 = arith.constant 0 : index
    %c0_63 = arith.constant 0 : index
    %134 = vector.load %arg16[%c0_62, %c0_63] : memref<1x128xf32, #tpu.memory_space<vmem>>, vector<1x128xf32>
    %135 = vector.broadcast %134 : vector<1x128xf32> to vector<2x128xf32>
    %136 = arith.addf %133, %135 : vector<2x128xf32>
    %137 = math.tanh %136 : vector<2x128xf32>
    %c0_64 = arith.constant 0 : index
    %c0_65 = arith.constant 0 : index
    %138 = vector.load %arg20[%c0_64, %c0_65] : memref<2x128xf32, #tpu.memory_space<vmem>>, vector<2x128xf32>
    tpu.vector_store %arg20[%c0_64, %c0_65], %137 {strides = array<i32>} : memref<2x128xf32, #tpu.memory_space<vmem>>, vector<2x128xf32>,
    %139 = arith.truncf %137 : vector<2x128xf32> to vector<2x128xbf16>
    %c0_66 = arith.constant 0 : index
    %c0_67 = arith.constant 0 : index
    %140 = vector.load %arg17[%c0_66, %c0_67] : memref<128x128xbf16, #tpu.memory_space<vmem>>, vector<128x128xbf16>
    %cst_68 = arith.constant dense<0.000000e+00> : vector<2x128xf32>
    %141 = tpu.matmul %139, %140, %cst_68 {dimension_numbers = #tpu.dot_dimension_numbers<[1], [0], [0], [1], [0, 0, 1, 1], [], []>} : vector<2x128xbf16>, vector<128x128xbf16>, vector<2x128xf32> -> vector<2x128xf32>
    %c0_69 = arith.constant 0 : index
    %c0_70 = arith.constant 0 : index
    %142 = vector.load %arg18[%c0_69, %c0_70] : memref<1x128xf32, #tpu.memory_space<vmem>>, vector<1x128xf32>
    %143 = vector.broadcast %142 : vector<1x128xf32> to vector<2x128xf32>
    %144 = arith.addf %141, %143 : vector<2x128xf32>
    %c0_71 = arith.constant 0 : index
    %c0_72 = arith.constant 0 : index
    %145 = vector.load %arg21[%c0_71, %c0_72] : memref<2x128xf32, #tpu.memory_space<vmem>>, vector<2x128xf32>
    tpu.vector_store %arg21[%c0_71, %c0_72], %144 {strides = array<i32>} : memref<2x128xf32, #tpu.memory_space<vmem>>, vector<2x128xf32>,
    return
  }
  func.func @transform_0(%arg0: i32) -> (i32, i32, i32) {
    %c0_i32 = arith.constant 0 : i32
    %c0_i32_0 = arith.constant 0 : i32
    %c0_i32_1 = arith.constant 0 : i32
    return %arg0, %c0_i32, %c0_i32_0 : i32, i32, i32
  }
  func.func @transform_1(%arg0: i32) -> (i32, i32, i32) {
    %c0_i32 = arith.constant 0 : i32
    %c0_i32_0 = arith.constant 0 : i32
    %c0_i32_1 = arith.constant 0 : i32
    return %arg0, %c0_i32, %c0_i32_0 : i32, i32, i32
  }
  func.func @transform_2(%arg0: i32) -> (i32, i32) {
    %c0_i32 = arith.constant 0 : i32
    %c0_i32_0 = arith.constant 0 : i32
    %c0_i32_1 = arith.constant 0 : i32
    return %c0_i32, %c0_i32_0 : i32, i32
  }
  func.func @transform_3(%arg0: i32) -> (i32, i32) {
    %c0_i32 = arith.constant 0 : i32
    %c0_i32_0 = arith.constant 0 : i32
    %c0_i32_1 = arith.constant 0 : i32
    return %c0_i32, %c0_i32_0 : i32, i32
  }
  func.func @transform_4(%arg0: i32) -> (i32, i32) {
    %c0_i32 = arith.constant 0 : i32
    %c0_i32_0 = arith.constant 0 : i32
    %c0_i32_1 = arith.constant 0 : i32
    return %c0_i32, %c0_i32_0 : i32, i32
  }
  func.func @transform_5(%arg0: i32) -> (i32, i32) {
    %c0_i32 = arith.constant 0 : i32
    %c0_i32_0 = arith.constant 0 : i32
    %c0_i32_1 = arith.constant 0 : i32
    return %c0_i32, %c0_i32_0 : i32, i32
  }
  func.func @transform_6(%arg0: i32) -> (i32, i32) {
    %c0_i32 = arith.constant 0 : i32
    %c0_i32_0 = arith.constant 0 : i32
    %c0_i32_1 = arith.constant 0 : i32
    return %c0_i32, %c0_i32_0 : i32, i32
  }
  func.func @transform_7(%arg0: i32) -> (i32, i32) {
    %c0_i32 = arith.constant 0 : i32
    %c0_i32_0 = arith.constant 0 : i32
    %c0_i32_1 = arith.constant 0 : i32
    return %c0_i32, %c0_i32_0 : i32, i32
  }
  func.func @transform_8(%arg0: i32) -> (i32, i32) {
    %c0_i32 = arith.constant 0 : i32
    %c0_i32_0 = arith.constant 0 : i32
    %c0_i32_1 = arith.constant 0 : i32
    return %c0_i32, %c0_i32_0 : i32, i32
  }
  func.func @transform_9(%arg0: i32) -> (i32, i32) {
    %c0_i32 = arith.constant 0 : i32
    %c0_i32_0 = arith.constant 0 : i32
    %c0_i32_1 = arith.constant 0 : i32
    return %c0_i32, %c0_i32_0 : i32, i32
  }
  func.func @transform_10(%arg0: i32) -> (i32, i32) {
    %c0_i32 = arith.constant 0 : i32
    %c0_i32_0 = arith.constant 0 : i32
    %c0_i32_1 = arith.constant 0 : i32
    return %c0_i32, %c0_i32_0 : i32, i32
  }
  func.func @transform_11(%arg0: i32) -> (i32, i32) {
    %c0_i32 = arith.constant 0 : i32
    %c0_i32_0 = arith.constant 0 : i32
    %c0_i32_1 = arith.constant 0 : i32
    return %c0_i32, %c0_i32_0 : i32, i32
  }
  func.func @transform_12(%arg0: i32) -> (i32, i32) {
    %c0_i32 = arith.constant 0 : i32
    %c0_i32_0 = arith.constant 0 : i32
    %c0_i32_1 = arith.constant 0 : i32
    return %c0_i32, %c0_i32_0 : i32, i32
  }
  func.func @transform_13(%arg0: i32) -> (i32, i32) {
    %c0_i32 = arith.constant 0 : i32
    %c0_i32_0 = arith.constant 0 : i32
    %c0_i32_1 = arith.constant 0 : i32
    return %c0_i32, %c0_i32_0 : i32, i32
  }
  func.func @transform_14(%arg0: i32) -> (i32, i32) {
    %c0_i32 = arith.constant 0 : i32
    %c0_i32_0 = arith.constant 0 : i32
    %c0_i32_1 = arith.constant 0 : i32
    return %c0_i32, %c0_i32_0 : i32, i32
  }
  func.func @transform_15(%arg0: i32) -> (i32, i32) {
    %c0_i32 = arith.constant 0 : i32
    %c0_i32_0 = arith.constant 0 : i32
    %c0_i32_1 = arith.constant 0 : i32
    return %c0_i32, %c0_i32_0 : i32, i32
  }
  func.func @transform_16(%arg0: i32) -> (i32, i32) {
    %c0_i32 = arith.constant 0 : i32
    %c0_i32_0 = arith.constant 0 : i32
    %c0_i32_1 = arith.constant 0 : i32
    return %c0_i32, %c0_i32_0 : i32, i32
  }
  func.func @transform_17(%arg0: i32) -> (i32, i32) {
    %c0_i32 = arith.constant 0 : i32
    %c0_i32_0 = arith.constant 0 : i32
    %c0_i32_1 = arith.constant 0 : i32
    return %c0_i32, %c0_i32_0 : i32, i32
  }
  func.func @transform_18(%arg0: i32) -> (i32, i32, i32) {
    %c0_i32 = arith.constant 0 : i32
    %c0_i32_0 = arith.constant 0 : i32
    %c0_i32_1 = arith.constant 0 : i32
    return %arg0, %c0_i32, %c0_i32_0 : i32, i32, i32
  }
  func.func @transform_19(%arg0: i32) -> (i32, i32) {
    %c0_i32 = arith.constant 0 : i32
    %c0_i32_0 = arith.constant 0 : i32
    return %arg0, %c0_i32 : i32, i32
  }
  func.func @transform_20(%arg0: i32) -> (i32, i32) {
    %c0_i32 = arith.constant 0 : i32
    %c0_i32_0 = arith.constant 0 : i32
    return %arg0, %c0_i32 : i32, i32
  }
}

</mosaic_0001>

<llo_original>
// kernel: tpu_custom_call.1
$region0: #{tpu_custom_call.1}
  #allocation0 [shape = 'u32[]', space=smem, size = 0x4, offset = 0x4, fixed_abs, tag = 'smem constant byte address 0x4 - core index']
  #allocation1 [shape = 'u32[72,128]{1,0:T(1,128)}', space=vmem, size = 0x9000, scoped, tag = 'internal scratch']
  %s0 = inlined_call_operand.hbm [shape: f32[2,8,128], index: 0, kind: input, shape index: {}]
  %s1 = inlined_call_operand.hbm [shape: f32[2,1,8], index: 1, kind: input, shape index: {}]
  %s2 = inlined_call_operand.hbm [shape: bf16[128,384], index: 2, kind: input, shape index: {}]
  %s3 = inlined_call_operand.hbm [shape: f32[1,384], index: 3, kind: input, shape index: {}]
  %s4 = inlined_call_operand.hbm [shape: bf16[128,128], index: 4, kind: input, shape index: {}]
  %s5 = inlined_call_operand.vmem [shape: f32[1,128], index: 5, kind: input, shape index: {}]
  %s6 = inlined_call_operand.vmem [shape: f32[1,128], index: 6, kind: input, shape index: {}]
  %s7 = inlined_call_operand.vmem [shape: f32[1,128], index: 7, kind: input, shape index: {}]
  %s8 = inlined_call_operand.hbm [shape: bf16[128,256], index: 8, kind: input, shape index: {}]
  %s9 = inlined_call_operand.vmem [shape: f32[1,256], index: 9, kind: input, shape index: {}]
  %s10 = inlined_call_operand.hbm [shape: bf16[256,128], index: 10, kind: input, shape index: {}]
  %s11 = inlined_call_operand.vmem [shape: f32[1,128], index: 11, kind: input, shape index: {}]
  %s12 = inlined_call_operand.vmem [shape: f32[1,128], index: 12, kind: input, shape index: {}]
  %s13 = inlined_call_operand.vmem [shape: f32[1,128], index: 13, kind: input, shape index: {}]
  %s14 = inlined_call_operand.hbm [shape: bf16[128,128], index: 14, kind: input, shape index: {}]
  %s15 = inlined_call_operand.vmem [shape: f32[1,128], index: 15, kind: input, shape index: {}]
  %s16 = inlined_call_operand.hbm [shape: bf16[128,128], index: 16, kind: input, shape index: {}]
  %s17 = inlined_call_operand.vmem [shape: f32[1,128], index: 17, kind: input, shape index: {}]
  %s18 = inlined_call_operand.hbm [shape: f32[2,8,128], index: 18, kind: output, shape index: {0}]
  %s19 = inlined_call_operand.hbm [shape: f32[2,128], index: 19, kind: output, shape index: {1}]
  %s20 = inlined_call_operand.hbm [shape: f32[2,128], index: 20, kind: output, shape index: {2}]
  %21 = xla_tuple %s18, %s19, %s20
  %s22 = sld [smem:[#allocation0]]
  $region134: #{tpu_custom_call.1} parent=0
    _
  %s24 = ssub.s32 1, %s22
  %s25 = scalar_select 0, %s24, %s22
  $region1: #{tpu_custom_call.1} parent=0
    #allocation2 [shape = 'u8[8192]{0}', space=vmem, size = 0x2000, scoped, tag = 'input window, operand 0, single buffered']
    #allocation3 [shape = 's32[1]{0}', space=sflag, size = 0x4, scoped, tag = 'scoped memory for tpu_custom_call.1']
    #allocation4 [shape = 's32[1]{0}', space=sflag, size = 0x4, scoped, tag = 'scoped memory for tpu_custom_call.1']
    #allocation5 [shape = 'u8[1024]{0}', space=vmem, size = 0x400, scoped, tag = 'input window, operand 1, single buffered']
    #allocation6 [shape = 's32[1]{0}', space=sflag, size = 0x4, scoped, tag = 'scoped memory for tpu_custom_call.1']
    #allocation7 [shape = 'u8[98304]{0}', space=vmem, size = 0x18000, scoped, tag = 'input window, operand 2, single buffered']
    #allocation8 [shape = 'u8[1536]{0}', space=vmem, size = 0x800, scoped, tag = 'input window, operand 3, single buffered']
    #allocation9 [shape = 's32[1]{0}', space=sflag, size = 0x4, scoped, tag = 'scoped memory for tpu_custom_call.1']
    #allocation10 [shape = 'u8[32768]{0}', space=vmem, size = 0x8000, scoped, tag = 'input window, operand 4, single buffered']
    #allocation11 [shape = 'u8[65536]{0}', space=vmem, size = 0x10000, scoped, tag = 'input window, operand 8, single buffered']
    #allocation12 [shape = 's32[1]{0}', space=sflag, size = 0x4, scoped, tag = 'scoped memory for tpu_custom_call.1']
    #allocation13 [shape = 'u8[65536]{0}', space=vmem, size = 0x10000, scoped, tag = 'input window, operand 10, single buffered']
    #allocation14 [shape = 'u8[32768]{0}', space=vmem, size = 0x8000, scoped, tag = 'input window, operand 14, single buffered']
    #allocation15 [shape = 's32[1]{0}', space=sflag, size = 0x4, scoped, tag = 'scoped memory for tpu_custom_call.1']
    #allocation16 [shape = 'u8[32768]{0}', space=vmem, size = 0x8000, scoped, tag = 'input window, operand 16, single buffered']
    #allocation17 [shape = 'u8[8192]{0}', space=vmem, size = 0x2000, scoped, tag = 'output window, operand 0, single buffered']
    #allocation18 [shape = 'u8[1024]{0}', space=vmem, size = 0x400, scoped, tag = 'output window, operand 1, single buffered']
    #allocation19 [shape = 's32[1]{0}', space=sflag, size = 0x4, scoped, tag = 'scoped memory for tpu_custom_call.1']
    #allocation20 [shape = 'u8[1024]{0}', space=vmem, size = 0x400, scoped, tag = 'output window, operand 2, single buffered']
    %26 = vsyncpa [#allocation3], 0
    %27 = vsyncpa [#allocation6], 0
    %28 = vsyncpa [#allocation9], 0
    %29 = vsyncpa [#allocation12], 0
    %30 = vsyncpa [#allocation15], 0
    %31 = vsyncpa [#allocation4], 0
    %32 = vsyncpa [#allocation19], 0
    // Predicated region
    $region2: #{tpu_custom_call.1} parent=1 // pred_check
      _
    $region3: #{tpu_custom_call.1} parent=1 // pred_check_branch
      %34 = sbr.rel (0) target = $region5
    $region4: #{tpu_custom_call.1} parent=1 // pred_region
      %36 = vsyncadd [#allocation3], 0
      %s37 = sshll.u32 %s0, 4
      %s38 = int_to_ptr.hbm [resolvable:$true] %s37
      %s39 = sshll.u32 [#allocation2], 4
      %s40 = int_to_ptr.vmem [resolvable:$true] %s39
      %45 = dma.hbm_to_vmem [thread:$0]  %s38, 256, %s40, [#allocation3], 128, 128, 8
    $region5: #{tpu_custom_call.1} parent=1 // pred_fallthru
      _
    // Predicated region
    $region6: #{tpu_custom_call.1} parent=1 // pred_check
      _
    $region7: #{tpu_custom_call.1} parent=1 // pred_check_branch
      %47 = sbr.rel (0) target = $region9
    $region8: #{tpu_custom_call.1} parent=1 // pred_region
      %49 = vsyncadd [#allocation6], 0
      %s50 = sshll.u32 %s1, 4
      %s51 = int_to_ptr.hbm [resolvable:$true] %s50
      %s52 = sshll.u32 [#allocation5], 4
      %s53 = int_to_ptr.vmem [resolvable:$true] %s52
      %58 = dma.hbm_to_vmem [thread:$0]  %s51, 32, %s53, [#allocation6], 16, 16, 1
    $region9: #{tpu_custom_call.1} parent=1 // pred_fallthru
      _
    // Predicated region
    $region10: #{tpu_custom_call.1} parent=1 // pred_check
      _
    $region11: #{tpu_custom_call.1} parent=1 // pred_check_branch
      %60 = sbr.rel (0) target = $region13
    $region12: #{tpu_custom_call.1} parent=1 // pred_region
      %62 = vsyncadd [#allocation6], 0
      %s63 = sshll.u32 %s2, 4
      %s64 = int_to_ptr.hbm [resolvable:$true] %s63
      %s65 = sshll.u32 [#allocation7], 4
      %s66 = int_to_ptr.vmem [resolvable:$true] %s65
      %71 = dma.hbm_to_vmem [thread:$0]  %s64, 3072, %s66, [#allocation6], 192, 192, 12
    $region13: #{tpu_custom_call.1} parent=1 // pred_fallthru
      _
    // Predicated region
    $region14: #{tpu_custom_call.1} parent=1 // pred_check
      _
    $region15: #{tpu_custom_call.1} parent=1 // pred_check_branch
      %73 = sbr.rel (0) target = $region17
    $region16: #{tpu_custom_call.1} parent=1 // pred_region
      %75 = vsyncadd [#allocation9], 0
      %s77 = sshll.u32 %s3, 4
      %s78 = int_to_ptr.hbm [resolvable:$true] %s77
      %s79 = sshll.u32 [#allocation8], 4
      %s80 = int_to_ptr.vmem [resolvable:$true] %s79
      %82 = dma.hbm_to_vmem [thread:$0]  %s78, 48, %s80, [#allocation9]
    $region17: #{tpu_custom_call.1} parent=1 // pred_fallthru
      _
    // Predicated region
    $region18: #{tpu_custom_call.1} parent=1 // pred_check
      _
    $region19: #{tpu_custom_call.1} parent=1 // pred_check_branch
      %84 = sbr.rel (0) target = $region21
    $region20: #{tpu_custom_call.1} parent=1 // pred_region
      %86 = vsyncadd [#allocation9], 0
      %s87 = sshll.u32 %s4, 4
      %s88 = int_to_ptr.hbm [resolvable:$true] %s87
      %s89 = sshll.u32 [#allocation10], 4
      %s90 = int_to_ptr.vmem [resolvable:$true] %s89
      %95 = dma.hbm_to_vmem [thread:$0]  %s88, 1024, %s90, [#allocation9], 64, 64, 4
    $region21: #{tpu_custom_call.1} parent=1 // pred_fallthru
      _
    // Predicated region
    $region22: #{tpu_custom_call.1} parent=1 // pred_check
      _
    $region23: #{tpu_custom_call.1} parent=1 // pred_check_branch
      %97 = sbr.rel (0) target = $region25
    $region24: #{tpu_custom_call.1} parent=1 // pred_region
      _
    $region25: #{tpu_custom_call.1} parent=1 // pred_fallthru
      _
    // Predicated region
    $region26: #{tpu_custom_call.1} parent=1 // pred_check
      _
    $region27: #{tpu_custom_call.1} parent=1 // pred_check_branch
      %99 = sbr.rel (0) target = $region29
    $region28: #{tpu_custom_call.1} parent=1 // pred_region
      _
    $region29: #{tpu_custom_call.1} parent=1 // pred_fallthru
      _
    // Predicated region
    $region30: #{tpu_custom_call.1} parent=1 // pred_check
      _
    $region31: #{tpu_custom_call.1} parent=1 // pred_check_branch
      %101 = sbr.rel (0) target = $region33
    $region32: #{tpu_custom_call.1} parent=1 // pred_region
      _
    $region33: #{tpu_custom_call.1} parent=1 // pred_fallthru
      _
    // Predicated region
    $region34: #{tpu_custom_call.1} parent=1 // pred_check
      _
    $region35: #{tpu_custom_call.1} parent=1 // pred_check_branch
      %103 = sbr.rel (0) target = $region37
    $region36: #{tpu_custom_call.1} parent=1 // pred_region
      %105 = vsyncadd [#allocation12], 0
      %s106 = sshll.u32 %s8, 4
      %s107 = int_to_ptr.hbm [resolvable:$true] %s106
      %s108 = sshll.u32 [#allocation11], 4
      %s109 = int_to_ptr.vmem [resolvable:$true] %s108
      %114 = dma.hbm_to_vmem [thread:$0]  %s107, 2048, %s109, [#allocation12], 128, 128, 8
    $region37: #{tpu_custom_call.1} parent=1 // pred_fallthru
      _
    // Predicated region
    $region38: #{tpu_custom_call.1} parent=1 // pred_check
      _
    $region39: #{tpu_custom_call.1} parent=1 // pred_check_branch
      %116 = sbr.rel (0) target = $region41
    $region40: #{tpu_custom_call.1} parent=1 // pred_region
      _
    $region41: #{tpu_custom_call.1} parent=1 // pred_fallthru
      _
    // Predicated region
    $region42: #{tpu_custom_call.1} parent=1 // pred_check
      _
    $region43: #{tpu_custom_call.1} parent=1 // pred_check_branch
      %118 = sbr.rel (0) target = $region45
    $region44: #{tpu_custom_call.1} parent=1 // pred_region
      %120 = vsyncadd [#allocation12], 0
      %s121 = sshll.u32 %s10, 4
      %s122 = int_to_ptr.hbm [resolvable:$true] %s121
      %s123 = sshll.u32 [#allocation13], 4
      %s124 = int_to_ptr.vmem [resolvable:$true] %s123
      %129 = dma.hbm_to_vmem [thread:$0]  %s122, 2048, %s124, [#allocation12], 64, 64, 4
    $region45: #{tpu_custom_call.1} parent=1 // pred_fallthru
      _
    // Predicated region
    $region46: #{tpu_custom_call.1} parent=1 // pred_check
      _
    $region47: #{tpu_custom_call.1} parent=1 // pred_check_branch
      %131 = sbr.rel (0) target = $region49
    $region48: #{tpu_custom_call.1} parent=1 // pred_region
      _
    $region49: #{tpu_custom_call.1} parent=1 // pred_fallthru
      _
    // Predicated region
    $region50: #{tpu_custom_call.1} parent=1 // pred_check
      _
    $region51: #{tpu_custom_call.1} parent=1 // pred_check_branch
      %133 = sbr.rel (0) target = $region53
    $region52: #{tpu_custom_call.1} parent=1 // pred_region
      _
    $region53: #{tpu_custom_call.1} parent=1 // pred_fallthru
      _
    // Predicated region
    $region54: #{tpu_custom_call.1} parent=1 // pred_check
      _
    $region55: #{tpu_custom_call.1} parent=1 // pred_check_branch
      %135 = sbr.rel (0) target = $region57
    $region56: #{tpu_custom_call.1} parent=1 // pred_region
      _
    $region57: #{tpu_custom_call.1} parent=1 // pred_fallthru
      _
    // Predicated region
    $region58: #{tpu_custom_call.1} parent=1 // pred_check
      _
    $region59: #{tpu_custom_call.1} parent=1 // pred_check_branch
      %137 = sbr.rel (0) target = $region61
    $region60: #{tpu_custom_call.1} parent=1 // pred_region
      %139 = vsyncadd [#allocation15], 0
      %s140 = sshll.u32 %s14, 4
      %s141 = int_to_ptr.hbm [resolvable:$true] %s140
      %s142 = sshll.u32 [#allocation14], 4
      %s143 = int_to_ptr.vmem [resolvable:$true] %s142
      %148 = dma.hbm_to_vmem [thread:$0]  %s141, 1024, %s143, [#allocation15], 64, 64, 4
    $region61: #{tpu_custom_call.1} parent=1 // pred_fallthru
      _
    // Predicated region
    $region62: #{tpu_custom_call.1} parent=1 // pred_check
      _
    $region63: #{tpu_custom_call.1} parent=1 // pred_check_branch
      %150 = sbr.rel (0) target = $region65
    $region64: #{tpu_custom_call.1} parent=1 // pred_region
      _
    $region65: #{tpu_custom_call.1} parent=1 // pred_fallthru
      _
    // Predicated region
    $region66: #{tpu_custom_call.1} parent=1 // pred_check
      _
    $region67: #{tpu_custom_call.1} parent=1 // pred_check_branch
      %152 = sbr.rel (0) target = $region69
    $region68: #{tpu_custom_call.1} parent=1 // pred_region
      %154 = vsyncadd [#allocation15], 0
      %s155 = sshll.u32 %s16, 4
      %s156 = int_to_ptr.hbm [resolvable:$true] %s155
      %s157 = sshll.u32 [#allocation16], 4
      %s158 = int_to_ptr.vmem [resolvable:$true] %s157
      %163 = dma.hbm_to_vmem [thread:$0]  %s156, 1024, %s158, [#allocation15], 64, 64, 4
    $region69: #{tpu_custom_call.1} parent=1 // pred_fallthru
      _
    // Predicated region
    $region70: #{tpu_custom_call.1} parent=1 // pred_check
      _
    $region71: #{tpu_custom_call.1} parent=1 // pred_check_branch
      %165 = sbr.rel (0) target = $region73
    $region72: #{tpu_custom_call.1} parent=1 // pred_region
      _
    $region73: #{tpu_custom_call.1} parent=1 // pred_fallthru
      _
    // Predicated region
    $region74: #{tpu_custom_call.1} parent=1 // pred_check
      _
    $region75: #{tpu_custom_call.1} parent=1 // pred_check_branch
      %167 = sbr.rel (0) target = $region77
    $region76: #{tpu_custom_call.1} parent=1 // pred_region
      %169 = dma.done [#allocation3], 256
    $region77: #{tpu_custom_call.1} parent=1 // pred_fallthru
      _
    // Predicated region
    $region78: #{tpu_custom_call.1} parent=1 // pred_check
      _
    $region79: #{tpu_custom_call.1} parent=1 // pred_check_branch
      %171 = sbr.rel (0) target = $region81
    $region80: #{tpu_custom_call.1} parent=1 // pred_region
      %173 = dma.done [#allocation6], 32
    $region81: #{tpu_custom_call.1} parent=1 // pred_fallthru
      _
    // Predicated region
    $region82: #{tpu_custom_call.1} parent=1 // pred_check
      _
    $region83: #{tpu_custom_call.1} parent=1 // pred_check_branch
      %175 = sbr.rel (0) target = $region85
    $region84: #{tpu_custom_call.1} parent=1 // pred_region
      %177 = dma.done [#allocation6], 3072
    $region85: #{tpu_custom_call.1} parent=1 // pred_fallthru
      _
    // Predicated region
    $region86: #{tpu_custom_call.1} parent=1 // pred_check
      _
    $region87: #{tpu_custom_call.1} parent=1 // pred_check_branch
      %179 = sbr.rel (0) target = $region89
    $region88: #{tpu_custom_call.1} parent=1 // pred_region
      %181 = dma.done [#allocation9], 48
    $region89: #{tpu_custom_call.1} parent=1 // pred_fallthru
      _
    // Predicated region
    $region90: #{tpu_custom_call.1} parent=1 // pred_check
      _
    $region91: #{tpu_custom_call.1} parent=1 // pred_check_branch
      %183 = sbr.rel (0) target = $region93
    $region92: #{tpu_custom_call.1} parent=1 // pred_region
      %185 = dma.done [#allocation9], 1024
    $region93: #{tpu_custom_call.1} parent=1 // pred_fallthru
      _
    // Predicated region
    $region94: #{tpu_custom_call.1} parent=1 // pred_check
      _
    $region95: #{tpu_custom_call.1} parent=1 // pred_check_branch
      %187 = sbr.rel (0) target = $region97
    $region96: #{tpu_custom_call.1} parent=1 // pred_region
      %189 = dma.done [#allocation12], 2048
    $region97: #{tpu_custom_call.1} parent=1 // pred_fallthru
      _
    // Predicated region
    $region98: #{tpu_custom_call.1} parent=1 // pred_check
      _
    $region99: #{tpu_custom_call.1} parent=1 // pred_check_branch
      %191 = sbr.rel (0) target = $region101
    $region100: #{tpu_custom_call.1} parent=1 // pred_region
      %193 = dma.done [#allocation12], 2048
    $region101: #{tpu_custom_call.1} parent=1 // pred_fallthru
      _
    // Predicated region
    $region102: #{tpu_custom_call.1} parent=1 // pred_check
      _
    $region103: #{tpu_custom_call.1} parent=1 // pred_check_branch
      %195 = sbr.rel (0) target = $region105
    $region104: #{tpu_custom_call.1} parent=1 // pred_region
      %197 = dma.done [#allocation15], 1024
    $region105: #{tpu_custom_call.1} parent=1 // pred_fallthru
      _
    // Predicated region
    $region106: #{tpu_custom_call.1} parent=1 // pred_check
      _
    $region107: #{tpu_custom_call.1} parent=1 // pred_check_branch
      %199 = sbr.rel (0) target = $region109
    $region108: #{tpu_custom_call.1} parent=1 // pred_region
      %201 = dma.done [#allocation15], 1024
    $region109: #{tpu_custom_call.1} parent=1 // pred_fallthru
      _
    %v203 = vld [vmem:[#allocation2] sm:$0xff]
    %v204 = vld [vmem:[#allocation2 + $0x8] sm:$0xff]
    %v205 = vld [vmem:[#allocation5] sm:$0x1]
    %v206 = vld [vmem:[#allocation5 + $0x1] sm:$0x1]
    %v207 = vsub.f32 1.0, %v205
    %v208 = vsub.f32 1.0, %v206
    %v209 = vmul.f32 %v207, -1e+09
    %v210 = vmul.f32 %v208, -1e+09
    %v211 = vpack.c.bf16 %v204, %v203
    %v212 = vld [vmem:[#allocation7] sm:$0xff]
    %v213 = vld [vmem:[#allocation7 + $0x8] sm:$0xf]
    %v214 = vld [vmem:[#allocation7 + $0xc] sm:$0xff]
    %v215 = vld [vmem:[#allocation7 + $0x14] sm:$0xf]
    %v216 = vld [vmem:[#allocation7 + $0x18] sm:$0xff]
    %v217 = vld [vmem:[#allocation7 + $0x20] sm:$0xf]
    %v218 = vld [vmem:[#allocation7 + $0x24] sm:$0xff]
    %v219 = vld [vmem:[#allocation7 + $0x2c] sm:$0xf]
    %v220 = vld [vmem:[#allocation7 + $0x30] sm:$0xff]
    %v221 = vld [vmem:[#allocation7 + $0x38] sm:$0xf]
    %v222 = vld [vmem:[#allocation7 + $0x3c] sm:$0xff]
    %v223 = vld [vmem:[#allocation7 + $0x44] sm:$0xf]
    %v224 = vld [vmem:[#allocation7 + $0x48] sm:$0xff]
    %v225 = vld [vmem:[#allocation7 + $0x50] sm:$0xf]
    %v226 = vld [vmem:[#allocation7 + $0x54] sm:$0xff]
    %v227 = vld [vmem:[#allocation7 + $0x5c] sm:$0xf]
    %v228 = vld [vmem:[#allocation7 + $0x60] sm:$0xff]
    %v229 = vld [vmem:[#allocation7 + $0x68] sm:$0xf]
    %v230 = vld [vmem:[#allocation7 + $0x6c] sm:$0xff]
    %v231 = vld [vmem:[#allocation7 + $0x74] sm:$0xf]
    %v232 = vld [vmem:[#allocation7 + $0x78] sm:$0xff]
    %v233 = vld [vmem:[#allocation7 + $0x80] sm:$0xf]
    %v234 = vld [vmem:[#allocation7 + $0x84] sm:$0xff]
    %v235 = vld [vmem:[#allocation7 + $0x8c] sm:$0xf]
    %v236 = vld [vmem:[#allocation7 + $0x90] sm:$0xff]
    %v237 = vld [vmem:[#allocation7 + $0x98] sm:$0xf]
    %v238 = vld [vmem:[#allocation7 + $0x9c] sm:$0xff]
    %v239 = vld [vmem:[#allocation7 + $0xa4] sm:$0xf]
    %v240 = vld [vmem:[#allocation7 + $0xa8] sm:$0xff]
    %v241 = vld [vmem:[#allocation7 + $0xb0] sm:$0xf]
    %v242 = vld [vmem:[#allocation7 + $0xb4] sm:$0xff]
    %v243 = vld [vmem:[#allocation7 + $0xbc] sm:$0xf]
    %v244 = vld [vmem:[#allocation8] sm:$0x7]
    %v246 = vperm.slane %v244, 0
    %v247 = vperm.slane %v244, 1
    %v248 = vperm.slane %v244, 2
    %v284 = vunpack.c.l.b16 %v212
    %v285 = vunpack.c.h.b16 %v212
    %v286 = vunpack.c.l.b16 %v213
    %v287 = vunpack.c.l.b16 %v214
    %v288 = vunpack.c.h.b16 %v214
    %v289 = vunpack.c.l.b16 %v215
    %v290 = vunpack.c.l.b16 %v216
    %v291 = vunpack.c.h.b16 %v216
    %v292 = vunpack.c.l.b16 %v217
    %v293 = vunpack.c.l.b16 %v218
    %v294 = vunpack.c.h.b16 %v218
    %v295 = vunpack.c.l.b16 %v219
    %v296 = vunpack.c.l.b16 %v220
    %v297 = vunpack.c.h.b16 %v220
    %v298 = vunpack.c.l.b16 %v221
    %v299 = vunpack.c.l.b16 %v222
    %v300 = vunpack.c.h.b16 %v222
    %v301 = vunpack.c.l.b16 %v223
    %v302 = vunpack.c.l.b16 %v224
    %v303 = vunpack.c.h.b16 %v224
    %v304 = vunpack.c.l.b16 %v225
    %v305 = vunpack.c.l.b16 %v226
    %v306 = vunpack.c.h.b16 %v226
    %v307 = vunpack.c.l.b16 %v227
    %v308 = vunpack.c.l.b16 %v228
    %v309 = vunpack.c.h.b16 %v228
    %v310 = vunpack.c.l.b16 %v229
    %v311 = vunpack.c.l.b16 %v230
    %v312 = vunpack.c.h.b16 %v230
    %v313 = vunpack.c.l.b16 %v231
    %v314 = vunpack.c.l.b16 %v232
    %v315 = vunpack.c.h.b16 %v232
    %v316 = vunpack.c.l.b16 %v233
    %v317 = vunpack.c.l.b16 %v234
    %v318 = vunpack.c.h.b16 %v234
    %v319 = vunpack.c.l.b16 %v235
    %v320 = vunpack.c.l.b16 %v236
    %v321 = vunpack.c.h.b16 %v236
    %v322 = vunpack.c.l.b16 %v237
    %v323 = vunpack.c.l.b16 %v238
    %v324 = vunpack.c.h.b16 %v238
    %v325 = vunpack.c.l.b16 %v239
    %v326 = vunpack.c.l.b16 %v240
    %v327 = vunpack.c.h.b16 %v240
    %v328 = vunpack.c.l.b16 %v241
    %v329 = vunpack.c.l.b16 %v242
    %v330 = vunpack.c.h.b16 %v242
    %v331 = vunpack.c.l.b16 %v243
    %v332 = vpack.c.b16 %v287, %v284
    %v333 = vpack.c.b16 %v288, %v285
    %v334 = vpack.c.b16 %v289, %v286
    %v335 = vpack.c.b16 %v293, %v290
    %v336 = vpack.c.b16 %v294, %v291
    %v337 = vpack.c.b16 %v295, %v292
    %v338 = vpack.c.b16 %v299, %v296
    %v339 = vpack.c.b16 %v300, %v297
    %v340 = vpack.c.b16 %v301, %v298
    %v341 = vpack.c.b16 %v305, %v302
    %v342 = vpack.c.b16 %v306, %v303
    %v343 = vpack.c.b16 %v307, %v304
    %v344 = vpack.c.b16 %v311, %v308
    %v345 = vpack.c.b16 %v312, %v309
    %v346 = vpack.c.b16 %v313, %v310
    %v347 = vpack.c.b16 %v317, %v314
    %v348 = vpack.c.b16 %v318, %v315
    %v349 = vpack.c.b16 %v319, %v316
    %v350 = vpack.c.b16 %v323, %v320
    %v351 = vpack.c.b16 %v324, %v321
    %v352 = vpack.c.b16 %v325, %v322
    %v353 = vpack.c.b16 %v329, %v326
    %v354 = vpack.c.b16 %v330, %v327
    %v355 = vpack.c.b16 %v331, %v328
    %380 = vmatpush.bf16.msra.mxu0 %v353
    %381 = vmatpush.bf16.msra.mxu0 %v350
    %382 = vmatpush.bf16.msra.mxu0 %v347
    %383 = vmatpush.bf16.msra.mxu0 %v344
    %384 = vmatpush.bf16.msra.mxu0 %v341
    %385 = vmatpush.bf16.msra.mxu0 %v338
    %386 = vmatpush.bf16.msra.mxu0 %v335
    %387 = vmatpush.bf16.msra.mxu0 %v332
    %388 = vmatmul.bf16.gmra.mxu0 %v211
    %v389 = vpop.f32.mrf.mxu0
    %v390 = vadd.f32 %v246, %v389
    %v391 = vpop.f32.mrf.mxu0
    %v392 = vadd.f32 %v246, %v391
    %393 = vdwg.mxu0
    %394 = vmatpush.bf16.msra.mxu0 %v354
    %395 = vmatpush.bf16.msra.mxu0 %v351
    %396 = vmatpush.bf16.msra.mxu0 %v348
    %397 = vmatpush.bf16.msra.mxu0 %v345
    %398 = vmatpush.bf16.msra.mxu0 %v342
    %399 = vmatpush.bf16.msra.mxu0 %v339
    %400 = vmatpush.bf16.msra.mxu0 %v336
    %401 = vmatpush.bf16.msra.mxu0 %v333
    %402 = vmatmul.bf16.gmra.mxu0 %v211
    %v403 = vpop.f32.mrf.mxu0
    %v404 = vadd.f32 %v247, %v403
    %v405 = vpop.f32.mrf.mxu0
    %v406 = vadd.f32 %v247, %v405
    %407 = vdwg.mxu0
    %408 = vmatpush.bf16.msra.mxu0 %v355
    %409 = vmatpush.bf16.msra.mxu0 %v352
    %410 = vmatpush.bf16.msra.mxu0 %v349
    %411 = vmatpush.bf16.msra.mxu0 %v346
    %412 = vmatpush.bf16.msra.mxu0 %v343
    %413 = vmatpush.bf16.msra.mxu0 %v340
    %414 = vmatpush.bf16.msra.mxu0 %v337
    %415 = vmatpush.bf16.msra.mxu0 %v334
    %416 = vmatmul.bf16.gmra.mxu0 %v211
    %v417 = vpop.f32.mrf.mxu0
    %v418 = vadd.f32 %v248, %v417
    %v419 = vpop.f32.mrf.mxu0
    %v420 = vadd.f32 %v248, %v419
    %421 = vdwg.mxu0
    %v422 = vpack.c.bf16 %v390, %v390
    %v423 = vpack.c.bf16 %v392, %v392
    %v424 = vpack.c.bf16 %v404, %v404
    %v425 = vpack.c.bf16 %v406, %v406
    %v426 = vpack.c.bf16 %v418, %v418
    %v427 = vpack.c.bf16 %v420, %v420
    %428 = vmatpush.bf16.xpose.msra.mxu0 0
    %429 = vmatpush.bf16.xpose.msra.mxu0 0
    %430 = vmatpush.bf16.xpose.msra.mxu0 0
    %431 = vmatpush.bf16.xpose.msra.mxu0 0
    %432 = vmatpush.bf16.xpose.msra.mxu0 0
    %433 = vmatpush.bf16.xpose.msra.mxu0 0
    %434 = vmatpush.bf16.xpose.msra.mxu0 0
    %435 = vmatpush.bf16.xpose.msra.mxu0 %v424
    %436 = vmatmul.bf16.gmra.mxu0 %v422
    %v437 = vpop.f32.mrf.mxu0
    %v438 = vadd.f32 0.0, %v437
    %v439 = vpop.f32.mrf.mxu0
    %440 = vdwg.mxu0
    %441 = vmatpush.bf16.xpose.msra.mxu0 0
    %442 = vmatpush.bf16.xpose.msra.mxu0 0
    %443 = vmatpush.bf16.xpose.msra.mxu0 0
    %444 = vmatpush.bf16.xpose.msra.mxu0 0
    %445 = vmatpush.bf16.xpose.msra.mxu0 0
    %446 = vmatpush.bf16.xpose.msra.mxu0 0
    %447 = vmatpush.bf16.xpose.msra.mxu0 0
    %448 = vmatpush.bf16.xpose.msra.mxu0 %v425
    %449 = vmatmul.bf16.gmra.mxu0 %v423
    %v450 = vpop.f32.mrf.mxu0
    %v451 = vadd.f32 0.0, %v450
    %v452 = vpop.f32.mrf.mxu0
    %453 = vdwg.mxu0
    %v454 = vmul.f32 %v438, 0.088388346
    %v455 = vmul.f32 %v451, 0.088388346
    %v458 = vperm.slane %v209, 0
    %v459 = vperm.slane %v210, 0
    %v462 = vadd.f32 %v454, %v458
    %v463 = vadd.f32 %v455, %v459
    %vm464 = vcmask 64512
    %v465 = vsel %vm464, %v462, -inf
    %466 = vmax.xlane.f32.xlu0 %v465
    %v467 = vpop.xlane.xlu0 %466
    %v468 = vsel %vm464, %v463, -inf
    %469 = vmax.xlane.f32.xlu0 %v468
    %v470 = vpop.xlane.xlu0 %469
    %v471 = vsub.f32 %v462, %v467
    %v472 = vsub.f32 %v463, %v470
    %v473 = vmul.f32 %v471, 1.442695
    %v474 = vpow.pop %v473
    %v475 = vmul.f32 %v472, 1.442695
    %v476 = vpow.pop %v475
    %v477 = vsel %vm464, %v474, 0.0
    %478 = vadd.xlane.f32.xlu0 %v477
    %v479 = vpop.xlane.xlu0 %478
    %v480 = vsel %vm464, %v476, 0.0
    %481 = vadd.xlane.f32.xlu0 %v480
    %v482 = vpop.xlane.xlu0 %481
    %v483 = vrcp.pop %v479
    %v484 = vrcp.pop %v482
    %v485 = vmul.f32 %v474, %v483
    %v486 = vmul.f32 %v476, %v484
    %v487 = vpack.c.bf16 %v485, %v485
    %v488 = vpack.c.bf16 %v486, %v486
    %v490 = vsel %vm464, %v487, 0
    %vm492 = vcmask 1043456
    %v494 = vsel %vm492, %v426, 0
    %496 = vmatpush.bf16.msra.mxu0 0
    %497 = vmatpush.bf16.msra.mxu0 0
    %498 = vmatpush.bf16.msra.mxu0 0
    %499 = vmatpush.bf16.msra.mxu0 0
    %500 = vmatpush.bf16.msra.mxu0 0
    %501 = vmatpush.bf16.msra.mxu0 0
    %502 = vmatpush.bf16.msra.mxu0 0
    %503 = vmatpush.bf16.msra.mxu0 %v494
    %504 = vmatmul.bf16.gmra.mxu0 %v490
    %v505 = vpop.f32.mrf.mxu0
    %v506 = vadd.f32 0.0, %v505
    %v507 = vpop.f32.mrf.mxu0
    %508 = vdwg.mxu0
    %v510 = vsel %vm464, %v488, 0
    %v513 = vsel %vm492, %v427, 0
    %515 = vmatpush.bf16.msra.mxu0 0
    %516 = vmatpush.bf16.msra.mxu0 0
    %517 = vmatpush.bf16.msra.mxu0 0
    %518 = vmatpush.bf16.msra.mxu0 0
    %519 = vmatpush.bf16.msra.mxu0 0
    %520 = vmatpush.bf16.msra.mxu0 0
    %521 = vmatpush.bf16.msra.mxu0 0
    %522 = vmatpush.bf16.msra.mxu0 %v513
    %523 = vmatmul.bf16.gmra.mxu0 %v510
    %v524 = vpop.f32.mrf.mxu0
    %v525 = vadd.f32 0.0, %v524
    %v526 = vpop.f32.mrf.mxu0
    %527 = vdwg.mxu0
    %v528 = vpack.c.bf16 %v525, %v506
    %v529 = vld [vmem:[#allocation10] sm:$0xf]
    %v530 = vld [vmem:[#allocation10 + $0x4] sm:$0xf]
    %v531 = vld [vmem:[#allocation10 + $0x8] sm:$0xf]
    %v532 = vld [vmem:[#allocation10 + $0xc] sm:$0xf]
    %v533 = vld [vmem:[#allocation10 + $0x10] sm:$0xf]
    %v534 = vld [vmem:[#allocation10 + $0x14] sm:$0xf]
    %v535 = vld [vmem:[#allocation10 + $0x18] sm:$0xf]
    %v536 = vld [vmem:[#allocation10 + $0x1c] sm:$0xf]
    %v537 = vld [vmem:[#allocation10 + $0x20] sm:$0xf]
    %v538 = vld [vmem:[#allocation10 + $0x24] sm:$0xf]
    %v539 = vld [vmem:[#allocation10 + $0x28] sm:$0xf]
    %v540 = vld [vmem:[#allocation10 + $0x2c] sm:$0xf]
    %v541 = vld [vmem:[#allocation10 + $0x30] sm:$0xf]
    %v542 = vld [vmem:[#allocation10 + $0x34] sm:$0xf]
    %v543 = vld [vmem:[#allocation10 + $0x38] sm:$0xf]
    %v544 = vld [vmem:[#allocation10 + $0x3c] sm:$0xf]
    %v545 = vld [vmem:[%s5] sm:$0x1]
    %v547 = vperm.slane %v545, 0
    %v565 = vunpack.c.l.b16 %v529
    %v566 = vunpack.c.l.b16 %v530
    %v567 = vunpack.c.l.b16 %v531
    %v568 = vunpack.c.l.b16 %v532
    %v569 = vunpack.c.l.b16 %v533
    %v570 = vunpack.c.l.b16 %v534
    %v571 = vunpack.c.l.b16 %v535
    %v572 = vunpack.c.l.b16 %v536
    %v573 = vunpack.c.l.b16 %v537
    %v574 = vunpack.c.l.b16 %v538
    %v575 = vunpack.c.l.b16 %v539
    %v576 = vunpack.c.l.b16 %v540
    %v577 = vunpack.c.l.b16 %v541
    %v578 = vunpack.c.l.b16 %v542
    %v579 = vunpack.c.l.b16 %v543
    %v580 = vunpack.c.l.b16 %v544
    %v581 = vpack.c.b16 %v566, %v565
    %v582 = vpack.c.b16 %v568, %v567
    %v583 = vpack.c.b16 %v570, %v569
    %v584 = vpack.c.b16 %v572, %v571
    %v585 = vpack.c.b16 %v574, %v573
    %v586 = vpack.c.b16 %v576, %v575
    %v587 = vpack.c.b16 %v578, %v577
    %v588 = vpack.c.b16 %v580, %v579
    %597 = vmatpush.bf16.msra.mxu0 %v588
    %598 = vmatpush.bf16.msra.mxu0 %v587
    %599 = vmatpush.bf16.msra.mxu0 %v586
    %600 = vmatpush.bf16.msra.mxu0 %v585
    %601 = vmatpush.bf16.msra.mxu0 %v584
    %602 = vmatpush.bf16.msra.mxu0 %v583
    %603 = vmatpush.bf16.msra.mxu0 %v582
    %604 = vmatpush.bf16.msra.mxu0 %v581
    %605 = vmatmul.bf16.gmra.mxu0 %v528
    %v606 = vpop.f32.mrf.mxu0
    %v607 = vadd.f32 %v547, %v606
    %v608 = vpop.f32.mrf.mxu0
    %v609 = vadd.f32 %v547, %v608
    %610 = vdwg.mxu0
    %v611 = vadd.f32 %v203, %v607
    %v612 = vadd.f32 %v204, %v609
    %v613 = vld [vmem:[%s6] sm:$0x1]
    %v614 = vld [vmem:[%s7] sm:$0x1]
    %615 = vadd.xlane.f32.xlu0 %v611
    %v616 = vpop.xlane.xlu0 %615
    %617 = vadd.xlane.f32.xlu0 %v612
    %v618 = vpop.xlane.xlu0 %617
    %v619 = vrcp.pop 128.0
    %v620 = vmul.f32 128.0, %v619
    %v621 = vsub.f32 1.0, %v620
    %v622 = vmul.f32 %v619, %v621
    %v623 = vadd.f32 %v619, %v622
    %vm624 = vweird.f32 %v619
    %v625 = vsel %vm624, %v619, %v623
    %v626 = vmul.f32 %v616, %v625
    %v627 = vmul.f32 %v618, %v625
    %v628 = vsub.f32 %v611, %v626
    %v629 = vsub.f32 %v612, %v627
    %v630 = vmul.f32 %v628, %v628
    %v631 = vmul.f32 %v629, %v629
    %632 = vadd.xlane.f32.xlu0 %v630
    %v633 = vpop.xlane.xlu0 %632
    %634 = vadd.xlane.f32.xlu0 %v631
    %v635 = vpop.xlane.xlu0 %634
    %v636 = vmul.f32 %v633, %v625
    %v637 = vmul.f32 %v635, %v625
    %v638 = vadd.f32 %v636, 1e-12
    %v639 = vadd.f32 %v637, 1e-12
    %v640 = vrsqrt.pop %v638
    %v641 = vmul.f32 %v640, %v638
    %v642 = vmul.f32 %v641, %v640
    %v643 = vmul.f32 0.5, %v642
    %v644 = vsub.f32 1.5, %v643
    %v645 = vmul.f32 %v640, %v644
    %vm646 = vweird.f32 %v638
    %vm647 = vweird.f32 %v640
    %vm648 = vmor %vm646, %vm647
    %v649 = vsel %vm648, %v640, %v645
    %v650 = vrsqrt.pop %v639
    %v651 = vmul.f32 %v650, %v639
    %v652 = vmul.f32 %v651, %v650
    %v653 = vmul.f32 0.5, %v652
    %v654 = vsub.f32 1.5, %v653
    %v655 = vmul.f32 %v650, %v654
    %vm656 = vweird.f32 %v639
    %vm657 = vweird.f32 %v650
    %vm658 = vmor %vm656, %vm657
    %v659 = vsel %vm658, %v650, %v655
    %v660 = vmul.f32 %v628, %v649
    %v661 = vmul.f32 %v629, %v659
    %v663 = vperm.slane %v613, 0
    %v665 = vmul.f32 %v660, %v663
    %v666 = vmul.f32 %v661, %v663
    %v668 = vperm.slane %v614, 0
    %v670 = vadd.f32 %v665, %v668
    %v671 = vadd.f32 %v666, %v668
    %v672 = vpack.c.bf16 %v671, %v670
    %v673 = vld [vmem:[#allocation11] sm:$0xff]
    %v674 = vld [vmem:[#allocation11 + $0x8] sm:$0xff]
    %v675 = vld [vmem:[#allocation11 + $0x10] sm:$0xff]
    %v676 = vld [vmem:[#allocation11 + $0x18] sm:$0xff]
    %v677 = vld [vmem:[#allocation11 + $0x20] sm:$0xff]
    %v678 = vld [vmem:[#allocation11 + $0x28] sm:$0xff]
    %v679 = vld [vmem:[#allocation11 + $0x30] sm:$0xff]
    %v680 = vld [vmem:[#allocation11 + $0x38] sm:$0xff]
    %v681 = vld [vmem:[#allocation11 + $0x40] sm:$0xff]
    %v682 = vld [vmem:[#allocation11 + $0x48] sm:$0xff]
    %v683 = vld [vmem:[#allocation11 + $0x50] sm:$0xff]
    %v684 = vld [vmem:[#allocation11 + $0x58] sm:$0xff]
    %v685 = vld [vmem:[#allocation11 + $0x60] sm:$0xff]
    %v686 = vld [vmem:[#allocation11 + $0x68] sm:$0xff]
    %v687 = vld [vmem:[#allocation11 + $0x70] sm:$0xff]
    %v688 = vld [vmem:[#allocation11 + $0x78] sm:$0xff]
    %v689 = vld [vmem:[%s9] sm:$0x3]
    %v691 = vperm.slane %v689, 0
    %v692 = vperm.slane %v689, 1
    %v711 = vunpack.c.l.b16 %v673
    %v712 = vunpack.c.h.b16 %v673
    %v713 = vunpack.c.l.b16 %v674
    %v714 = vunpack.c.h.b16 %v674
    %v715 = vunpack.c.l.b16 %v675
    %v716 = vunpack.c.h.b16 %v675
    %v717 = vunpack.c.l.b16 %v676
    %v718 = vunpack.c.h.b16 %v676
    %v719 = vunpack.c.l.b16 %v677
    %v720 = vunpack.c.h.b16 %v677
    %v721 = vunpack.c.l.b16 %v678
    %v722 = vunpack.c.h.b16 %v678
    %v723 = vunpack.c.l.b16 %v679
    %v724 = vunpack.c.h.b16 %v679
    %v725 = vunpack.c.l.b16 %v680
    %v726 = vunpack.c.h.b16 %v680
    %v727 = vunpack.c.l.b16 %v681
    %v728 = vunpack.c.h.b16 %v681
    %v729 = vunpack.c.l.b16 %v682
    %v730 = vunpack.c.h.b16 %v682
    %v731 = vunpack.c.l.b16 %v683
    %v732 = vunpack.c.h.b16 %v683
    %v733 = vunpack.c.l.b16 %v684
    %v734 = vunpack.c.h.b16 %v684
    %v735 = vunpack.c.l.b16 %v685
    %v736 = vunpack.c.h.b16 %v685
    %v737 = vunpack.c.l.b16 %v686
    %v738 = vunpack.c.h.b16 %v686
    %v739 = vunpack.c.l.b16 %v687
    %v740 = vunpack.c.h.b16 %v687
    %v741 = vunpack.c.l.b16 %v688
    %v742 = vunpack.c.h.b16 %v688
    %v743 = vpack.c.b16 %v713, %v711
    %v744 = vpack.c.b16 %v714, %v712
    %v745 = vpack.c.b16 %v717, %v715
    %v746 = vpack.c.b16 %v718, %v716
    %v747 = vpack.c.b16 %v721, %v719
    %v748 = vpack.c.b16 %v722, %v720
    %v749 = vpack.c.b16 %v725, %v723
    %v750 = vpack.c.b16 %v726, %v724
    %v751 = vpack.c.b16 %v729, %v727
    %v752 = vpack.c.b16 %v730, %v728
    %v753 = vpack.c.b16 %v733, %v731
    %v754 = vpack.c.b16 %v734, %v732
    %v755 = vpack.c.b16 %v737, %v735
    %v756 = vpack.c.b16 %v738, %v736
    %v757 = vpack.c.b16 %v741, %v739
    %v758 = vpack.c.b16 %v742, %v740
    %775 = vmatpush.bf16.msra.mxu0 %v757
    %776 = vmatpush.bf16.msra.mxu0 %v755
    %777 = vmatpush.bf16.msra.mxu0 %v753
    %778 = vmatpush.bf16.msra.mxu0 %v751
    %779 = vmatpush.bf16.msra.mxu0 %v749
    %780 = vmatpush.bf16.msra.mxu0 %v747
    %781 = vmatpush.bf16.msra.mxu0 %v745
    %782 = vmatpush.bf16.msra.mxu0 %v743
    %783 = vmatmul.bf16.gmra.mxu0 %v672
    %v784 = vpop.f32.mrf.mxu0
    %v785 = vadd.f32 %v691, %v784
    %v786 = vpop.f32.mrf.mxu0
    %v787 = vadd.f32 %v691, %v786
    %788 = vdwg.mxu0
    %789 = vmatpush.bf16.msra.mxu0 %v758
    %790 = vmatpush.bf16.msra.mxu0 %v756
    %791 = vmatpush.bf16.msra.mxu0 %v754
    %792 = vmatpush.bf16.msra.mxu0 %v752
    %793 = vmatpush.bf16.msra.mxu0 %v750
    %794 = vmatpush.bf16.msra.mxu0 %v748
    %795 = vmatpush.bf16.msra.mxu0 %v746
    %796 = vmatpush.bf16.msra.mxu0 %v744
    %797 = vmatmul.bf16.gmra.mxu0 %v672
    %v798 = vpop.f32.mrf.mxu0
    %v799 = vadd.f32 %v692, %v798
    %v800 = vpop.f32.mrf.mxu0
    %v801 = vadd.f32 %v692, %v800
    %802 = vdwg.mxu0
    %v803 = vmul.f32 %v785, %v785
    %v804 = vmul.f32 %v799, %v799
    %v805 = vmul.f32 %v787, %v787
    %v806 = vmul.f32 %v801, %v801
    %v807 = vmul.f32 %v785, %v803
    %v808 = vmul.f32 %v799, %v804
    %v809 = vmul.f32 %v787, %v805
    %v810 = vmul.f32 %v801, %v806
    %v811 = vmul.f32 %v807, 0.044715
    %v812 = vmul.f32 %v808, 0.044715
    %v813 = vmul.f32 %v809, 0.044715
    %v814 = vmul.f32 %v810, 0.044715
    %v815 = vadd.f32 %v785, %v811
    %v816 = vadd.f32 %v799, %v812
    %v817 = vadd.f32 %v787, %v813
    %v818 = vadd.f32 %v801, %v814
    %v819 = vmul.f32 %v815, 0.7978846
    %v820 = vmul.f32 %v816, 0.7978846
    %v821 = vmul.f32 %v817, 0.7978846
    %v822 = vmul.f32 %v818, 0.7978846
    %v823 = vtanh.pop %v819
    %v824 = vtanh.pop %v820
    %v825 = vtanh.pop %v821
    %v826 = vtanh.pop %v822
    %v827 = vadd.f32 %v823, 1.0
    %v828 = vadd.f32 %v824, 1.0
    %v829 = vadd.f32 %v825, 1.0
    %v830 = vadd.f32 %v826, 1.0
    %v831 = vmul.f32 %v827, 0.5
    %v832 = vmul.f32 %v828, 0.5
    %v833 = vmul.f32 %v829, 0.5
    %v834 = vmul.f32 %v830, 0.5
    %v835 = vmul.f32 %v785, %v831
    %v836 = vmul.f32 %v799, %v832
    %v837 = vmul.f32 %v787, %v833
    %v838 = vmul.f32 %v801, %v834
    %v839 = vpack.c.bf16 %v837, %v835
    %v840 = vpack.c.bf16 %v838, %v836
    %v841 = vld [vmem:[#allocation13] sm:$0xf]
    %v842 = vld [vmem:[#allocation13 + $0x4] sm:$0xf]
    %v843 = vld [vmem:[#allocation13 + $0x8] sm:$0xf]
    %v844 = vld [vmem:[#allocation13 + $0xc] sm:$0xf]
    %v845 = vld [vmem:[#allocation13 + $0x10] sm:$0xf]
    %v846 = vld [vmem:[#allocation13 + $0x14] sm:$0xf]
    %v847 = vld [vmem:[#allocation13 + $0x18] sm:$0xf]
    %v848 = vld [vmem:[#allocation13 + $0x1c] sm:$0xf]
    %v849 = vld [vmem:[#allocation13 + $0x20] sm:$0xf]
    %v850 = vld [vmem:[#allocation13 + $0x24] sm:$0xf]
    %v851 = vld [vmem:[#allocation13 + $0x28] sm:$0xf]
    %v852 = vld [vmem:[#allocation13 + $0x2c] sm:$0xf]
    %v853 = vld [vmem:[#allocation13 + $0x30] sm:$0xf]
    %v854 = vld [vmem:[#allocation13 + $0x34] sm:$0xf]
    %v855 = vld [vmem:[#allocation13 + $0x38] sm:$0xf]
    %v856 = vld [vmem:[#allocation13 + $0x3c] sm:$0xf]
    %v857 = vld [vmem:[#allocation13 + $0x40] sm:$0xf]
    %v858 = vld [vmem:[#allocation13 + $0x44] sm:$0xf]
    %v859 = vld [vmem:[#allocation13 + $0x48] sm:$0xf]
    %v860 = vld [vmem:[#allocation13 + $0x4c] sm:$0xf]
    %v861 = vld [vmem:[#allocation13 + $0x50] sm:$0xf]
    %v862 = vld [vmem:[#allocation13 + $0x54] sm:$0xf]
    %v863 = vld [vmem:[#allocation13 + $0x58] sm:$0xf]
    %v864 = vld [vmem:[#allocation13 + $0x5c] sm:$0xf]
    %v865 = vld [vmem:[#allocation13 + $0x60] sm:$0xf]
    %v866 = vld [vmem:[#allocation13 + $0x64] sm:$0xf]
    %v867 = vld [vmem:[#allocation13 + $0x68] sm:$0xf]
    %v868 = vld [vmem:[#allocation13 + $0x6c] sm:$0xf]
    %v869 = vld [vmem:[#allocation13 + $0x70] sm:$0xf]
    %v870 = vld [vmem:[#allocation13 + $0x74] sm:$0xf]
    %v871 = vld [vmem:[#allocation13 + $0x78] sm:$0xf]
    %v872 = vld [vmem:[#allocation13 + $0x7c] sm:$0xf]
    %v873 = vld [vmem:[%s11] sm:$0x1]
    %v875 = vperm.slane %v873, 0
    %v909 = vunpack.c.l.b16 %v841
    %v910 = vunpack.c.l.b16 %v842
    %v911 = vunpack.c.l.b16 %v843
    %v912 = vunpack.c.l.b16 %v844
    %v913 = vunpack.c.l.b16 %v845
    %v914 = vunpack.c.l.b16 %v846
    %v915 = vunpack.c.l.b16 %v847
    %v916 = vunpack.c.l.b16 %v848
    %v917 = vunpack.c.l.b16 %v849
    %v918 = vunpack.c.l.b16 %v850
    %v919 = vunpack.c.l.b16 %v851
    %v920 = vunpack.c.l.b16 %v852
    %v921 = vunpack.c.l.b16 %v853
    %v922 = vunpack.c.l.b16 %v854
    %v923 = vunpack.c.l.b16 %v855
    %v924 = vunpack.c.l.b16 %v856
    %v925 = vunpack.c.l.b16 %v857
    %v926 = vunpack.c.l.b16 %v858
    %v927 = vunpack.c.l.b16 %v859
    %v928 = vunpack.c.l.b16 %v860
    %v929 = vunpack.c.l.b16 %v861
    %v930 = vunpack.c.l.b16 %v862
    %v931 = vunpack.c.l.b16 %v863
    %v932 = vunpack.c.l.b16 %v864
    %v933 = vunpack.c.l.b16 %v865
    %v934 = vunpack.c.l.b16 %v866
    %v935 = vunpack.c.l.b16 %v867
    %v936 = vunpack.c.l.b16 %v868
    %v937 = vunpack.c.l.b16 %v869
    %v938 = vunpack.c.l.b16 %v870
    %v939 = vunpack.c.l.b16 %v871
    %v940 = vunpack.c.l.b16 %v872
    %v941 = vpack.c.b16 %v910, %v909
    %v942 = vpack.c.b16 %v912, %v911
    %v943 = vpack.c.b16 %v914, %v913
    %v944 = vpack.c.b16 %v916, %v915
    %v945 = vpack.c.b16 %v918, %v917
    %v946 = vpack.c.b16 %v920, %v919
    %v947 = vpack.c.b16 %v922, %v921
    %v948 = vpack.c.b16 %v924, %v923
    %v949 = vpack.c.b16 %v926, %v925
    %v950 = vpack.c.b16 %v928, %v927
    %v951 = vpack.c.b16 %v930, %v929
    %v952 = vpack.c.b16 %v932, %v931
    %v953 = vpack.c.b16 %v934, %v933
    %v954 = vpack.c.b16 %v936, %v935
    %v955 = vpack.c.b16 %v938, %v937
    %v956 = vpack.c.b16 %v940, %v939
    %973 = vmatpush.bf16.msra.mxu0 %v948
    %974 = vmatpush.bf16.msra.mxu0 %v947
    %975 = vmatpush.bf16.msra.mxu0 %v946
    %976 = vmatpush.bf16.msra.mxu0 %v945
    %977 = vmatpush.bf16.msra.mxu0 %v944
    %978 = vmatpush.bf16.msra.mxu0 %v943
    %979 = vmatpush.bf16.msra.mxu0 %v942
    %980 = vmatpush.bf16.msra.mxu0 %v941
    %981 = vmatmul.bf16.gmra.mxu0 %v839
    %v982 = vpop.f32.mrf.mxu0
    %v983 = vadd.f32 %v875, %v982
    %v984 = vpop.f32.mrf.mxu0
    %v985 = vadd.f32 %v875, %v984
    %986 = vdwg.mxu0
    %987 = vmatpush.bf16.msra.mxu0 %v956
    %988 = vmatpush.bf16.msra.mxu0 %v955
    %989 = vmatpush.bf16.msra.mxu0 %v954
    %990 = vmatpush.bf16.msra.mxu0 %v953
    %991 = vmatpush.bf16.msra.mxu0 %v952
    %992 = vmatpush.bf16.msra.mxu0 %v951
    %993 = vmatpush.bf16.msra.mxu0 %v950
    %994 = vmatpush.bf16.msra.mxu0 %v949
    %995 = vmatmul.bf16.gmra.mxu0 %v840
    %v996 = vpop.f32.mrf.mxu0
    %v997 = vadd.f32 %v983, %v996
    %v998 = vpop.f32.mrf.mxu0
    %v999 = vadd.f32 %v985, %v998
    %1000 = vdwg.mxu0
    %v1001 = vadd.f32 %v670, %v997
    %v1002 = vadd.f32 %v671, %v999
    %v1003 = vld [vmem:[%s12] sm:$0x1]
    %v1004 = vld [vmem:[%s13] sm:$0x1]
    %1005 = vadd.xlane.f32.xlu0 %v1001
    %v1006 = vpop.xlane.xlu0 %1005
    %1007 = vadd.xlane.f32.xlu0 %v1002
    %v1008 = vpop.xlane.xlu0 %1007
    %v1009 = vmul.f32 %v1006, %v625
    %v1010 = vmul.f32 %v1008, %v625
    %v1011 = vsub.f32 %v1001, %v1009
    %v1012 = vsub.f32 %v1002, %v1010
    %v1013 = vmul.f32 %v1011, %v1011
    %v1014 = vmul.f32 %v1012, %v1012
    %1015 = vadd.xlane.f32.xlu0 %v1013
    %v1016 = vpop.xlane.xlu0 %1015
    %1017 = vadd.xlane.f32.xlu0 %v1014
    %v1018 = vpop.xlane.xlu0 %1017
    %v1019 = vmul.f32 %v1016, %v625
    %v1020 = vmul.f32 %v1018, %v625
    %v1021 = vadd.f32 %v1019, 1e-12
    %v1022 = vadd.f32 %v1020, 1e-12
    %v1023 = vrsqrt.pop %v1021
    %v1024 = vmul.f32 %v1023, %v1021
    %v1025 = vmul.f32 %v1024, %v1023
    %v1026 = vmul.f32 0.5, %v1025
    %v1027 = vsub.f32 1.5, %v1026
    %v1028 = vmul.f32 %v1023, %v1027
    %vm1029 = vweird.f32 %v1021
    %vm1030 = vweird.f32 %v1023
    %vm1031 = vmor %vm1029, %vm1030
    %v1032 = vsel %vm1031, %v1023, %v1028
    %v1033 = vrsqrt.pop %v1022
    %v1034 = vmul.f32 %v1033, %v1022
    %v1035 = vmul.f32 %v1034, %v1033
    %v1036 = vmul.f32 0.5, %v1035
    %v1037 = vsub.f32 1.5, %v1036
    %v1038 = vmul.f32 %v1033, %v1037
    %vm1039 = vweird.f32 %v1022
    %vm1040 = vweird.f32 %v1033
    %vm1041 = vmor %vm1039, %vm1040
    %v1042 = vsel %vm1041, %v1033, %v1038
    %v1043 = vmul.f32 %v1011, %v1032
    %v1044 = vmul.f32 %v1012, %v1042
    %v1046 = vperm.slane %v1003, 0
    %v1048 = vmul.f32 %v1043, %v1046
    %v1049 = vmul.f32 %v1044, %v1046
    %v1051 = vperm.slane %v1004, 0
    %v1053 = vadd.f32 %v1048, %v1051
    %v1054 = vadd.f32 %v1049, %v1051
    %1055 = vst [vmem:[#allocation17] sm:$0xff] %v1053
    %1056 = vst [vmem:[#allocation17 + $0x8] sm:$0xff] %v1054
    %v1058 = vsel %vm464, %v205, 0
    %1060 = vmatpush.msra.mxu0 0.0
    %1061 = vmatpush.msra.mxu0 0.0
    %1062 = vmatpush.msra.mxu0 0.0
    %1063 = vmatpush.msra.mxu0 0.0
    %1064 = vmatpush.msra.mxu0 0.0
    %1065 = vmatpush.msra.mxu0 0.0
    %1066 = vmatpush.msra.mxu0 0.0
    %1067 = vmatpush.msra.mxu0 0.0
    %1068 = vmatpush.msra.mxu0 0.0
    %1069 = vmatpush.msra.mxu0 0.0
    %1070 = vmatpush.msra.mxu0 0.0
    %1071 = vmatpush.msra.mxu0 0.0
    %1072 = vmatpush.msra.mxu0 0.0
    %1073 = vmatpush.msra.mxu0 0.0
    %1074 = vmatpush.msra.mxu0 0.0
    %1075 = vmatpush.msra.mxu0 %v1053
    %1076 = vmatmul.f32.gmra.mxu0 %v1058
    %v1077 = vpop.f32.mrf.mxu0
    %v1078 = vadd.f32 0.0, %v1077
    %1079 = vdwg.mxu0
    %v1081 = vsel %vm464, %v206, 0
    %1083 = vmatpush.msra.mxu0 0.0
    %1084 = vmatpush.msra.mxu0 0.0
    %1085 = vmatpush.msra.mxu0 0.0
    %1086 = vmatpush.msra.mxu0 0.0
    %1087 = vmatpush.msra.mxu0 0.0
    %1088 = vmatpush.msra.mxu0 0.0
    %1089 = vmatpush.msra.mxu0 0.0
    %1090 = vmatpush.msra.mxu0 0.0
    %1091 = vmatpush.msra.mxu0 0.0
    %1092 = vmatpush.msra.mxu0 0.0
    %1093 = vmatpush.msra.mxu0 0.0
    %1094 = vmatpush.msra.mxu0 0.0
    %1095 = vmatpush.msra.mxu0 0.0
    %1096 = vmatpush.msra.mxu0 0.0
    %1097 = vmatpush.msra.mxu0 0.0
    %1098 = vmatpush.msra.mxu0 %v1054
    %1099 = vmatmul.f32.gmra.mxu0 %v1081
    %v1100 = vpop.f32.mrf.mxu0
    %v1101 = vadd.f32 0.0, %v1100
    %1102 = vdwg.mxu0
    %vm1103 = vcmask 57344
    %v1104 = vsel %vm1103, %v205, 0.0
    %1105 = vadd.xlane.f32.xlu0 %v1104
    %v1106 = vpop.xlane.xlu0 %1105
    %v1107 = vsel %vm1103, %v206, 0.0
    %1108 = vadd.xlane.f32.xlu0 %v1107
    %v1109 = vpop.xlane.xlu0 %1108
    %v1110 = vmax.f32 %v1106, 1e-09
    %v1111 = vmax.f32 %v1109, 1e-09
    %v1112 = vrcp.pop %v1110
    %v1113 = vrcp.pop %v1111
    %v1114 = vperm.slane %v1112, 0
    %v1115 = vperm.slane %v1113, 0
    %v1116 = vmul.f32 %v1078, %v1114
    %v1117 = vmul.f32 %v1101, %v1115
    %v1118 = vpack.c.bf16 %v1116, %v1116
    %v1119 = vpack.c.bf16 %v1117, %v1117
    %v1120 = vld [vmem:[#allocation14] sm:$0xf]
    %v1121 = vld [vmem:[#allocation14 + $0x4] sm:$0xf]
    %v1122 = vld [vmem:[#allocation14 + $0x8] sm:$0xf]
    %v1123 = vld [vmem:[#allocation14 + $0xc] sm:$0xf]
    %v1124 = vld [vmem:[#allocation14 + $0x10] sm:$0xf]
    %v1125 = vld [vmem:[#allocation14 + $0x14] sm:$0xf]
    %v1126 = vld [vmem:[#allocation14 + $0x18] sm:$0xf]
    %v1127 = vld [vmem:[#allocation14 + $0x1c] sm:$0xf]
    %v1128 = vld [vmem:[#allocation14 + $0x20] sm:$0xf]
    %v1129 = vld [vmem:[#allocation14 + $0x24] sm:$0xf]
    %v1130 = vld [vmem:[#allocation14 + $0x28] sm:$0xf]
    %v1131 = vld [vmem:[#allocation14 + $0x2c] sm:$0xf]
    %v1132 = vld [vmem:[#allocation14 + $0x30] sm:$0xf]
    %v1133 = vld [vmem:[#allocation14 + $0x34] sm:$0xf]
    %v1134 = vld [vmem:[#allocation14 + $0x38] sm:$0xf]
    %v1135 = vld [vmem:[#allocation14 + $0x3c] sm:$0xf]
    %v1136 = vld [vmem:[%s15] sm:$0x1]
    %v1138 = vperm.slane %v1136, 0
    %v1142 = vunpack.c.l.b16 %v1118
    %v1143 = vunpack.c.l.b16 %v1119
    %v1144 = vrot.slane %v1143, 7
    %vm1145 = vcmask 1041409
    %v1146 = vsel %vm1145, %v1144, %v1142
    %v1147 = vpack.c.b16 %v1146, %v1146
    %v1165 = vunpack.c.l.b16 %v1120
    %v1166 = vunpack.c.l.b16 %v1121
    %v1167 = vunpack.c.l.b16 %v1122
    %v1168 = vunpack.c.l.b16 %v1123
    %v1169 = vunpack.c.l.b16 %v1124
    %v1170 = vunpack.c.l.b16 %v1125
    %v1171 = vunpack.c.l.b16 %v1126
    %v1172 = vunpack.c.l.b16 %v1127
    %v1173 = vunpack.c.l.b16 %v1128
    %v1174 = vunpack.c.l.b16 %v1129
    %v1175 = vunpack.c.l.b16 %v1130
    %v1176 = vunpack.c.l.b16 %v1131
    %v1177 = vunpack.c.l.b16 %v1132
    %v1178 = vunpack.c.l.b16 %v1133
    %v1179 = vunpack.c.l.b16 %v1134
    %v1180 = vunpack.c.l.b16 %v1135
    %v1181 = vpack.c.b16 %v1166, %v1165
    %v1182 = vpack.c.b16 %v1168, %v1167
    %v1183 = vpack.c.b16 %v1170, %v1169
    %v1184 = vpack.c.b16 %v1172, %v1171
    %v1185 = vpack.c.b16 %v1174, %v1173
    %v1186 = vpack.c.b16 %v1176, %v1175
    %v1187 = vpack.c.b16 %v1178, %v1177
    %v1188 = vpack.c.b16 %v1180, %v1179
    %1197 = vmatpush.bf16.msra.mxu0 %v1188
    %1198 = vmatpush.bf16.msra.mxu0 %v1187
    %1199 = vmatpush.bf16.msra.mxu0 %v1186
    %1200 = vmatpush.bf16.msra.mxu0 %v1185
    %1201 = vmatpush.bf16.msra.mxu0 %v1184
    %1202 = vmatpush.bf16.msra.mxu0 %v1183
    %1203 = vmatpush.bf16.msra.mxu0 %v1182
    %1204 = vmatpush.bf16.msra.mxu0 %v1181
    %1205 = vmatmul.bf16.gmra.mxu0 %v1147
    %v1206 = vpop.f32.mrf.mxu0
    %v1207 = vadd.f32 %v1138, %v1206
    %v1208 = vpop.f32.mrf.mxu0
    %1209 = vdwg.mxu0
    %v1210 = vtanh.pop %v1207
    %1211 = vst [vmem:[#allocation18] sm:$0x3] %v1210
    %v1212 = vpack.c.bf16 %v1210, %v1210
    %v1213 = vld [vmem:[#allocation16] sm:$0xf]
    %v1214 = vld [vmem:[#allocation16 + $0x4] sm:$0xf]
    %v1215 = vld [vmem:[#allocation16 + $0x8] sm:$0xf]
    %v1216 = vld [vmem:[#allocation16 + $0xc] sm:$0xf]
    %v1217 = vld [vmem:[#allocation16 + $0x10] sm:$0xf]
    %v1218 = vld [vmem:[#allocation16 + $0x14] sm:$0xf]
    %v1219 = vld [vmem:[#allocation16 + $0x18] sm:$0xf]
    %v1220 = vld [vmem:[#allocation16 + $0x1c] sm:$0xf]
    %v1221 = vld [vmem:[#allocation16 + $0x20] sm:$0xf]
    %v1222 = vld [vmem:[#allocation16 + $0x24] sm:$0xf]
    %v1223 = vld [vmem:[#allocation16 + $0x28] sm:$0xf]
    %v1224 = vld [vmem:[#allocation16 + $0x2c] sm:$0xf]
    %v1225 = vld [vmem:[#allocation16 + $0x30] sm:$0xf]
    %v1226 = vld [vmem:[#allocation16 + $0x34] sm:$0xf]
    %v1227 = vld [vmem:[#allocation16 + $0x38] sm:$0xf]
    %v1228 = vld [vmem:[#allocation16 + $0x3c] sm:$0xf]
    %v1229 = vld [vmem:[%s17] sm:$0x1]
    %v1231 = vperm.slane %v1229, 0
    %v1249 = vunpack.c.l.b16 %v1213
    %v1250 = vunpack.c.l.b16 %v1214
    %v1251 = vunpack.c.l.b16 %v1215
    %v1252 = vunpack.c.l.b16 %v1216
    %v1253 = vunpack.c.l.b16 %v1217
    %v1254 = vunpack.c.l.b16 %v1218
    %v1255 = vunpack.c.l.b16 %v1219
    %v1256 = vunpack.c.l.b16 %v1220
    %v1257 = vunpack.c.l.b16 %v1221
    %v1258 = vunpack.c.l.b16 %v1222
    %v1259 = vunpack.c.l.b16 %v1223
    %v1260 = vunpack.c.l.b16 %v1224
    %v1261 = vunpack.c.l.b16 %v1225
    %v1262 = vunpack.c.l.b16 %v1226
    %v1263 = vunpack.c.l.b16 %v1227
    %v1264 = vunpack.c.l.b16 %v1228
    %v1265 = vpack.c.b16 %v1250, %v1249
    %v1266 = vpack.c.b16 %v1252, %v1251
    %v1267 = vpack.c.b16 %v1254, %v1253
    %v1268 = vpack.c.b16 %v1256, %v1255
    %v1269 = vpack.c.b16 %v1258, %v1257
    %v1270 = vpack.c.b16 %v1260, %v1259
    %v1271 = vpack.c.b16 %v1262, %v1261
    %v1272 = vpack.c.b16 %v1264, %v1263
    %1281 = vmatpush.bf16.msra.mxu0 %v1272
    %1282 = vmatpush.bf16.msra.mxu0 %v1271
    %1283 = vmatpush.bf16.msra.mxu0 %v1270
    %1284 = vmatpush.bf16.msra.mxu0 %v1269
    %1285 = vmatpush.bf16.msra.mxu0 %v1268
    %1286 = vmatpush.bf16.msra.mxu0 %v1267
    %1287 = vmatpush.bf16.msra.mxu0 %v1266
    %1288 = vmatpush.bf16.msra.mxu0 %v1265
    %1289 = vmatmul.bf16.gmra.mxu0 %v1212
    %v1290 = vpop.f32.mrf.mxu0
    %v1291 = vadd.f32 %v1231, %v1290
    %v1292 = vpop.f32.mrf.mxu0
    %1293 = vdwg.mxu0
    %1294 = vst [vmem:[#allocation20] sm:$0x3] %v1291
    // Predicated region
    $region110: #{tpu_custom_call.1} parent=1 // pred_check
      _
    $region111: #{tpu_custom_call.1} parent=1 // pred_check_branch
      %1296 = sbr.rel (0) target = $region113
    $region112: #{tpu_custom_call.1} parent=1 // pred_region
      %1298 = vsyncadd [#allocation4], 0
      %s1299 = sshll.u32 [#allocation17], 4
      %s1300 = int_to_ptr.vmem [resolvable:$true] %s1299
      %s1301 = sshll.u32 %s18, 4
      %s1302 = int_to_ptr.hbm [resolvable:$true] %s1301
      %1307 = dma.vmem_to_hbm [thread:$0]  %s1300, 256, %s1302, [#allocation4], 128, 128, 8
    $region113: #{tpu_custom_call.1} parent=1 // pred_fallthru
      _
    // Predicated region
    $region114: #{tpu_custom_call.1} parent=1 // pred_check
      _
    $region115: #{tpu_custom_call.1} parent=1 // pred_check_branch
      %1309 = sbr.rel (0) target = $region117
    $region116: #{tpu_custom_call.1} parent=1 // pred_region
      %1311 = vsyncadd [#allocation19], 0
      %s1313 = sshll.u32 [#allocation18], 4
      %s1314 = int_to_ptr.vmem [resolvable:$true] %s1313
      %s1315 = sshll.u32 %s19, 4
      %s1316 = int_to_ptr.hbm [resolvable:$true] %s1315
      %1318 = dma.vmem_to_hbm [thread:$0]  %s1314, 32, %s1316, [#allocation19]
    $region117: #{tpu_custom_call.1} parent=1 // pred_fallthru
      _
    // Predicated region
    $region118: #{tpu_custom_call.1} parent=1 // pred_check
      _
    $region119: #{tpu_custom_call.1} parent=1 // pred_check_branch
      %1320 = sbr.rel (0) target = $region121
    $region120: #{tpu_custom_call.1} parent=1 // pred_region
      %1322 = vsyncadd [#allocation19], 0
      %s1324 = sshll.u32 [#allocation20], 4
      %s1325 = int_to_ptr.vmem [resolvable:$true] %s1324
      %s1326 = sshll.u32 %s20, 4
      %s1327 = int_to_ptr.hbm [resolvable:$true] %s1326
      %1329 = dma.vmem_to_hbm [thread:$0]  %s1325, 32, %s1327, [#allocation19]
    $region121: #{tpu_custom_call.1} parent=1 // pred_fallthru
      _
    // Predicated region
    $region122: #{tpu_custom_call.1} parent=1 // pred_check
      _
    $region123: #{tpu_custom_call.1} parent=1 // pred_check_branch
      %1331 = sbr.rel (0) target = $region125
    $region124: #{tpu_custom_call.1} parent=1 // pred_region
      %1333 = dma.done [#allocation4], 256
    $region125: #{tpu_custom_call.1} parent=1 // pred_fallthru
      _
    // Predicated region
    $region126: #{tpu_custom_call.1} parent=1 // pred_check
      _
    $region127: #{tpu_custom_call.1} parent=1 // pred_check_branch
      %1335 = sbr.rel (0) target = $region129
    $region128: #{tpu_custom_call.1} parent=1 // pred_region
      %1337 = dma.done [#allocation19], 32
    $region129: #{tpu_custom_call.1} parent=1 // pred_fallthru
      _
    // Predicated region
    $region130: #{tpu_custom_call.1} parent=1 // pred_check
      _
    $region131: #{tpu_custom_call.1} parent=1 // pred_check_branch
      %1339 = sbr.rel (0) target = $region133
    $region132: #{tpu_custom_call.1} parent=1 // pred_region
      %1341 = dma.done [#allocation19], 32
    $region133: #{tpu_custom_call.1} parent=1 // pred_fallthru
      _
    %1342 = vsyncpa [#allocation3], 1
    %1343 = vsyncpa [#allocation6], 1
    %1344 = vsyncpa [#allocation9], 1
    %1345 = vsyncpa [#allocation12], 1
    %1346 = vsyncpa [#allocation15], 1
    %1347 = vsyncpa [#allocation4], 1
    %1348 = vsyncpa [#allocation19], 1

</llo_original>
